<compile_context>
chip_gen: v6e
topology: v6e:2x2x1
jax: 0.10.0
libtpu: 0.0.40
codegen_flags: <defaults>
</compile_context>

<pallas_src>
import functools

import jax
import jax.numpy as jnp
from jax.experimental import pallas as pl
from jax.experimental.pallas import tpu as pltpu

LN_EPS = 1e-5  # PyTorch nn.LayerNorm default eps


def _layernorm(y, gamma, beta):
    """f32 LayerNorm over the last dim (gamma/beta are (1, D))."""
    mu = jnp.mean(y, axis=-1, keepdims=True)
    var = jnp.mean(jnp.square(y - mu), axis=-1, keepdims=True)
    return (y - mu) * jax.lax.rsqrt(var + LN_EPS) * gamma + beta


def encoder_layer_kernel(x_ref,
                         wqkv_ref, bqkv_ref, wo_ref, bo_ref,
                         g1_ref, be1_ref,
                         w1_ref, b1_ref, w2_ref, b2_ref,
                         g2_ref, be2_ref,
                         o_ref,
                         *, num_heads):
    f32, bf16 = jnp.float32, jnp.bfloat16

    x3 = x_ref[...]                          # (bb, S, D) f32
    bb, S, D = x3.shape
    H = num_heads
    dk = D // H
    R = bb * S

    # Major-dim merge (layout no-op): all row-wise matmuls see M = bb*S rows.
    x = x3.reshape(R, D)
    xb = x.astype(bf16)

    # ---- fused QKV: one lane-dense (R, D) @ (D, 3D) MXU matmul ----
    # 1/sqrt(dk) is pre-folded into the q columns of wqkv and into bq (host side).
    qkv = jnp.dot(xb, wqkv_ref[...], preferred_element_type=f32) + bqkv_ref[...]
    q2 = qkv[:, 0 * D:1 * D].astype(bf16)    # (R, D), 128-wide static lane slices
    k2 = qkv[:, 1 * D:2 * D].astype(bf16)
    v2 = qkv[:, 2 * D:3 * D].astype(bf16)

    # ---- head split only right before attention (static sublane/lane slices) ----
    def heads(m):                            # (R, D) -> (bb*H, S, dk)
        return jnp.stack(
            [m[b * S:(b + 1) * S, h * dk:(h + 1) * dk]
             for b in range(bb) for h in range(H)], axis=0)

    qh, kh, vh = heads(q2), heads(k2), heads(v2)

    # ---- all heads (and collapsed batch) in single batched matmuls ----
    s = jnp.einsum('gqd,gkd->gqk', qh, kh, preferred_element_type=f32)  # (G,S,S)
    s = s - jnp.max(s, axis=-1, keepdims=True)
    p = jnp.exp(s)
    denom = jnp.sum(p, axis=-1, keepdims=True)                          # (G,S,1)
    ctx = jnp.einsum('gqk,gkd->gqd', p.astype(bf16), vh,
                     preferred_element_type=f32)                        # (G,S,dk)
    # softmax normalization via EUP approximate reciprocal (free slot)
    ctx = ctx * pl.reciprocal(denom, approx=True)

    # ---- merge heads back to (R, D) and do ONE K=128 output projection ----
    merged = jnp.concatenate(
        [jnp.concatenate([ctx[b * H + h] for h in range(H)], axis=-1)
         for b in range(bb)], axis=0).astype(bf16)                      # (R, D)
    attn = jnp.dot(merged, wo_ref[...], preferred_element_type=f32) + bo_ref[...]

    # residual 1 (dropout == identity in eval mode)
    x = x + jax.nn.relu(_layernorm(attn, g1_ref[...], be1_ref[...]))

    # ---- position-wise feed forward ----
    h1 = jax.nn.relu(jnp.dot(x.astype(bf16), w1_ref[...],
                             preferred_element_type=f32) + b1_ref[...])
    ff = jnp.dot(h1.astype(bf16), w2_ref[...],
                 preferred_element_type=f32) + b2_ref[...]

    # residual 2
    x = x + jax.nn.relu(_layernorm(ff, g2_ref[...], be2_ref[...]))

    o_ref[...] = x.reshape(bb, S, D).astype(o_ref.dtype)


PARAM_ORDER = ('wqkv', 'bqkv', 'wo', 'bo', 'g1', 'be1',
               'w1', 'b1', 'w2', 'b2', 'g2', 'be2')


def fuse_params(p, num_heads):
    """Host-side (free) re-layout / cast of PyTorch-style params for the kernel."""
    f32, bf16 = jnp.float32, jnp.bfloat16
    D = p['wq'].shape[0]
    dk = D // num_heads
    scale = 1.0 / float(dk) ** 0.5

    # One (D, 3D) fused QKV weight; 1/sqrt(dk) folded into the q columns / bias.
    wqkv = jnp.concatenate([p['wq'] * scale, p['wk'], p['wv']], axis=1)   # (D, 3D)
    bqkv = jnp.concatenate([p['bq'] * scale, p['bk'], p['bv']], axis=1)   # (1, 3D)
    return {
        'wqkv': wqkv.astype(bf16),
        'bqkv': bqkv.astype(f32),
        'wo':   p['wo'].astype(bf16),        # original (D, D) layout: K=128 matmul
        'bo':   p['bo'].astype(f32),
        'g1':   p['g1'].astype(f32), 'be1': p['be1'].astype(f32),
        'w1':   p['w1'].astype(bf16), 'b1': p['b1'].astype(f32),
        'w2':   p['w2'].astype(bf16), 'b2': p['b2'].astype(f32),
        'g2':   p['g2'].astype(f32), 'be2': p['be2'].astype(f32),
    }


def _default_batch_block(B):
    """Batch rows per grid step. Single-TC chips (v5e/v6e): collapse the whole
    batch (one grid step). Multi-TC chips (v7x / megacore): keep >= 2 parallel
    grid steps so both TensorCores are used."""
    try:
        kind = jax.devices()[0].device_kind.lower()
    except Exception:
        return 1
    single_tc = any(t in kind for t in
                    ('v5e', 'v5 lite', 'v5lite', 'v6e', 'v6 lite', 'v6lite'))
    if single_tc:
        return B
    if B >= 2 and B % 2 == 0:
        return B // 2
    return 1


def _vmem_limit_bytes():
    """Generation-aware VMEM budget (~3/4 of physical, capped at 100 MiB)."""
    cap = 128 * 1024 * 1024
    try:
        cap = int(pltpu.get_tpu_info().vmem_capacity_bytes)
    except Exception:
        pass
    return min((cap * 3) // 4, 100 * 1024 * 1024)


def point_encoder_layer(x, params, num_heads, batch_block=None):
    B, S, D = x.shape
    fp = fuse_params(params, num_heads)
    dff = fp['w1'].shape[1]

    bb = batch_block if batch_block is not None else _default_batch_block(B)
    if bb < 1 or B % bb != 0:
        bb = 1
    grid = (B // bb,)

    in_specs = [pl.BlockSpec((bb, S, D), lambda i: (i, 0, 0))]
    args = [x]
    for name in PARAM_ORDER:
        p = fp[name]
        # Full-array, grid-invariant weight blocks (constant index_map).
        in_specs.append(pl.BlockSpec(p.shape, lambda i, n=p.ndim: (0,) * n))
        args.append(p)

    # Advisory cost estimate so XLA schedules/overlaps around the custom call.
    flops = (2 * B * S * D * (3 * D)            # fused QKV projection
             + 2 * 2 * B * S * S * D            # scores + context
             + 2 * B * S * D * D                # output projection
             + 2 * 2 * B * S * D * dff)         # FFN (two matmuls)
    bytes_accessed = 2 * x.size * x.dtype.itemsize + sum(
        int(p.size) * p.dtype.itemsize for p in fp.values())
    cost = pl.CostEstimate(flops=int(flops),
                           transcendentals=int(B * num_heads * S * S),
                           bytes_accessed=int(bytes_accessed))

    kernel = functools.partial(encoder_layer_kernel, num_heads=num_heads)
    return pl.pallas_call(
        kernel,
        out_shape=jax.ShapeDtypeStruct((B, S, D), x.dtype),
        grid_spec=pltpu.PrefetchScalarGridSpec(
            num_scalar_prefetch=0,
            grid=grid,
            in_specs=in_specs,
            out_specs=pl.BlockSpec((bb, S, D), lambda i: (i, 0, 0)),
        ),
        compiler_params=pltpu.CompilerParams(
            dimension_semantics=("parallel",),
            vmem_limit_bytes=_vmem_limit_bytes(),
        ),
        cost_estimate=cost,
    )(*args)


def init_params(key, d_model, d_ff):
    ks = jax.random.split(key, 10)
    sd = 1.0 / jnp.sqrt(jnp.float32(d_model))
    sf = 1.0 / jnp.sqrt(jnp.float32(d_ff))
    return {
        'wq': jax.random.normal(ks[0], (d_model, d_model), jnp.float32) * sd,
        'wk': jax.random.normal(ks[1], (d_model, d_model), jnp.float32) * sd,
        'wv': jax.random.normal(ks[2], (d_model, d_model), jnp.float32) * sd,
        'wo': jax.random.normal(ks[3], (d_model, d_model), jnp.float32) * sd,
        'bq': jax.random.normal(ks[4], (1, d_model), jnp.float32) * 0.01,
        'bk': jax.random.normal(ks[5], (1, d_model), jnp.float32) * 0.01,
        'bv': jax.random.normal(ks[6], (1, d_model), jnp.float32) * 0.01,
        'bo': jnp.zeros((1, d_model), jnp.float32),
        'g1': jnp.ones((1, d_model), jnp.float32),
        'be1': jnp.zeros((1, d_model), jnp.float32),
        'w1': jax.random.normal(ks[7], (d_model, d_ff), jnp.float32) * sd,
        'b1': jax.random.normal(ks[8], (1, d_ff), jnp.float32) * 0.01,
        'w2': jax.random.normal(ks[9], (d_ff, d_model), jnp.float32) * sf,
        'b2': jnp.zeros((1, d_model), jnp.float32),
        'g2': jnp.ones((1, d_model), jnp.float32),
        'be2': jnp.zeros((1, d_model), jnp.float32),
    }


def ref_forward(x, p, num_heads):
    """Pure-JAX reference mirroring the kernel's numerics (bf16 matmul operands,
    f32 accumulation / stats) for validation."""
    f32, bf16 = jnp.float32, jnp.bfloat16
    B, S, D = x.shape
    H = num_heads
    dk = D // H
    scale = 1.0 / float(dk) ** 0.5

    def mm(a, w):
        return jnp.matmul(a.astype(bf16), w.astype(bf16), preferred_element_type=f32)

    def ln(y, g, b):
        mu = y.mean(-1, keepdims=True)
        var = ((y - mu) ** 2).mean(-1, keepdims=True)
        return (y - mu) / jnp.sqrt(var + LN_EPS) * g + b

    q = (mm(x, p['wq']) + p['bq']) * scale
    k = mm(x, p['wk']) + p['bk']
    v = mm(x, p['wv']) + p['bv']
    q = q.reshape(B, S, H, dk).transpose(0, 2, 1, 3).astype(bf16)
    k = k.reshape(B, S, H, dk).transpose(0, 2, 1, 3).astype(bf16)
    v = v.reshape(B, S, H, dk).transpose(0, 2, 1, 3).astype(bf16)
    s = jnp.einsum('bhqd,bhkd->bhqk', q, k, preferred_element_type=f32)
    s = s - s.max(-1, keepdims=True)
    pr = jnp.exp(s)
    ctx = jnp.einsum('bhqk,bhkd->bhqd', pr.astype(bf16), v,
                     preferred_element_type=f32)
    ctx = ctx / pr.sum(-1, keepdims=True)
    merged = ctx.transpose(0, 2, 1, 3).reshape(B, S, D)
    attn = mm(merged, p['wo']) + p['bo']

    x = x + jax.nn.relu(ln(attn, p['g1'], p['be1']))
    h1 = jax.nn.relu(mm(x, p['w1']) + p['b1'])
    ff = mm(h1, p['w2']) + p['b2']
    x = x + jax.nn.relu(ln(ff, p['g2'], p['be2']))
    return x


if __name__ == "__main__":
    # Small but lane-dense shapes: D = 128 (multiple of 128), S multiple of 8.
    B, S, D, H, DFF = 2, 16, 128, 8, 256

    key = jax.random.PRNGKey(0)
    kx, kp = jax.random.split(key)
    x = jax.random.normal(kx, (B, S, D), jnp.float32)
    params = init_params(kp, D, DFF)

    out = jax.block_until_ready(point_encoder_layer(x, params, num_heads=H))
    ref = jax.block_until_ready(ref_forward(x, params, H))

    assert out.shape == (B, S, D)
    err = jnp.max(jnp.abs(out - ref))
    assert jnp.allclose(out, ref, atol=2e-2, rtol=2e-2), f"max abs err {err}"

    print("KERNEL_OK")
</pallas_src>

<mosaic_0001>
module attributes {stable_mosaic.version = 11 : i64} {
  func.func @encoder_layer_kernel(%arg0: i32, %arg1: memref<1x16x128xf32, #tpu.memory_space<vmem>>, %arg2: memref<128x384xbf16, #tpu.memory_space<vmem>>, %arg3: memref<1x384xf32, #tpu.memory_space<vmem>>, %arg4: memref<128x128xbf16, #tpu.memory_space<vmem>>, %arg5: memref<1x128xf32, #tpu.memory_space<vmem>>, %arg6: memref<1x128xf32, #tpu.memory_space<vmem>>, %arg7: memref<1x128xf32, #tpu.memory_space<vmem>>, %arg8: memref<128x256xbf16, #tpu.memory_space<vmem>>, %arg9: memref<1x256xf32, #tpu.memory_space<vmem>>, %arg10: memref<256x128xbf16, #tpu.memory_space<vmem>>, %arg11: memref<1x128xf32, #tpu.memory_space<vmem>>, %arg12: memref<1x128xf32, #tpu.memory_space<vmem>>, %arg13: memref<1x128xf32, #tpu.memory_space<vmem>>, %arg14: memref<1x16x128xf32, #tpu.memory_space<vmem>>) attributes {dimension_semantics = [#tpu.dimension_semantics<parallel>], iteration_bounds = array<i64: 2>, scalar_prefetch = 0 : i64, scratch_operands = 0 : i64, tpu.core_type = #tpu.core_type<tc>, window_params = [{transform_indices = @transform_0, window_bounds = array<i64: 1, 16, 128>}, {pipeline_mode = #tpu.pipeline_mode<synchronous>, transform_indices = @transform_1, window_bounds = array<i64: 128, 384>}, {pipeline_mode = #tpu.pipeline_mode<synchronous>, transform_indices = @transform_2, window_bounds = array<i64: 1, 384>}, {pipeline_mode = #tpu.pipeline_mode<synchronous>, transform_indices = @transform_3, window_bounds = array<i64: 128, 128>}, {pipeline_mode = #tpu.pipeline_mode<synchronous>, transform_indices = @transform_4, window_bounds = array<i64: 1, 128>}, {pipeline_mode = #tpu.pipeline_mode<synchronous>, transform_indices = @transform_5, window_bounds = array<i64: 1, 128>}, {pipeline_mode = #tpu.pipeline_mode<synchronous>, transform_indices = @transform_6, window_bounds = array<i64: 1, 128>}, {pipeline_mode = #tpu.pipeline_mode<synchronous>, transform_indices = @transform_7, window_bounds = array<i64: 128, 256>}, {pipeline_mode = #tpu.pipeline_mode<synchronous>, transform_indices = @transform_8, window_bounds = array<i64: 1, 256>}, {pipeline_mode = #tpu.pipeline_mode<synchronous>, transform_indices = @transform_9, window_bounds = array<i64: 256, 128>}, {pipeline_mode = #tpu.pipeline_mode<synchronous>, transform_indices = @transform_10, window_bounds = array<i64: 1, 128>}, {pipeline_mode = #tpu.pipeline_mode<synchronous>, transform_indices = @transform_11, window_bounds = array<i64: 1, 128>}, {pipeline_mode = #tpu.pipeline_mode<synchronous>, transform_indices = @transform_12, window_bounds = array<i64: 1, 128>}, {transform_indices = @transform_13, window_bounds = array<i64: 1, 16, 128>}]} {
    %c0 = arith.constant 0 : index
    %c0_0 = arith.constant 0 : index
    %c0_1 = arith.constant 0 : index
    %0 = vector.load %arg1[%c0, %c0_0, %c0_1] : memref<1x16x128xf32, #tpu.memory_space<vmem>>, vector<1x16x128xf32>
    %1 = vector.shape_cast %0 : vector<1x16x128xf32> to vector<16x128xf32>
    %2 = arith.truncf %1 : vector<16x128xf32> to vector<16x128xbf16>
    %c0_2 = arith.constant 0 : index
    %c0_3 = arith.constant 0 : index
    %3 = vector.load %arg2[%c0_2, %c0_3] : memref<128x384xbf16, #tpu.memory_space<vmem>>, vector<128x384xbf16>
    %cst = arith.constant dense<0.000000e+00> : vector<16x384xf32>
    %4 = tpu.matmul %2, %3, %cst {dimension_numbers = #tpu.dot_dimension_numbers<[1], [0], [0], [1], [0, 0, 1, 1], [], []>} : vector<16x128xbf16>, vector<128x384xbf16>, vector<16x384xf32> -> vector<16x384xf32>
    %c0_4 = arith.constant 0 : index
    %c0_5 = arith.constant 0 : index
    %5 = vector.load %arg3[%c0_4, %c0_5] : memref<1x384xf32, #tpu.memory_space<vmem>>, vector<1x384xf32>
    %6 = vector.broadcast %5 : vector<1x384xf32> to vector<16x384xf32>
    %7 = arith.addf %4, %6 : vector<16x384xf32>
    %8 = vector.extract_strided_slice %7 {offsets = [0, 0], sizes = [16, 128], strides = [1, 1]} : vector<16x384xf32> to vector<16x128xf32>
    %9 = arith.truncf %8 : vector<16x128xf32> to vector<16x128xbf16>
    %10 = vector.extract_strided_slice %7 {offsets = [0, 128], sizes = [16, 128], strides = [1, 1]} : vector<16x384xf32> to vector<16x128xf32>
    %11 = arith.truncf %10 : vector<16x128xf32> to vector<16x128xbf16>
    %12 = vector.extract_strided_slice %7 {offsets = [0, 256], sizes = [16, 128], strides = [1, 1]} : vector<16x384xf32> to vector<16x128xf32>
    %13 = arith.truncf %12 : vector<16x128xf32> to vector<16x128xbf16>
    %14 = vector.extract_strided_slice %9 {offsets = [0, 0], sizes = [16, 16], strides = [1, 1]} : vector<16x128xbf16> to vector<16x16xbf16>
    %15 = vector.extract_strided_slice %9 {offsets = [0, 16], sizes = [16, 16], strides = [1, 1]} : vector<16x128xbf16> to vector<16x16xbf16>
    %16 = vector.extract_strided_slice %9 {offsets = [0, 32], sizes = [16, 16], strides = [1, 1]} : vector<16x128xbf16> to vector<16x16xbf16>
    %17 = vector.extract_strided_slice %9 {offsets = [0, 48], sizes = [16, 16], strides = [1, 1]} : vector<16x128xbf16> to vector<16x16xbf16>
    %18 = vector.extract_strided_slice %9 {offsets = [0, 64], sizes = [16, 16], strides = [1, 1]} : vector<16x128xbf16> to vector<16x16xbf16>
    %19 = vector.extract_strided_slice %9 {offsets = [0, 80], sizes = [16, 16], strides = [1, 1]} : vector<16x128xbf16> to vector<16x16xbf16>
    %20 = vector.extract_strided_slice %9 {offsets = [0, 96], sizes = [16, 16], strides = [1, 1]} : vector<16x128xbf16> to vector<16x16xbf16>
    %21 = vector.extract_strided_slice %9 {offsets = [0, 112], sizes = [16, 16], strides = [1, 1]} : vector<16x128xbf16> to vector<16x16xbf16>
    %22 = vector.shape_cast %14 : vector<16x16xbf16> to vector<1x16x16xbf16>
    %23 = vector.shape_cast %15 : vector<16x16xbf16> to vector<1x16x16xbf16>
    %24 = vector.shape_cast %16 : vector<16x16xbf16> to vector<1x16x16xbf16>
    %25 = vector.shape_cast %17 : vector<16x16xbf16> to vector<1x16x16xbf16>
    %26 = vector.shape_cast %18 : vector<16x16xbf16> to vector<1x16x16xbf16>
    %27 = vector.shape_cast %19 : vector<16x16xbf16> to vector<1x16x16xbf16>
    %28 = vector.shape_cast %20 : vector<16x16xbf16> to vector<1x16x16xbf16>
    %29 = vector.shape_cast %21 : vector<16x16xbf16> to vector<1x16x16xbf16>
    %30 = tpu.concatenate %22, %23, %24, %25, %26, %27, %28, %29 in 0 : vector<1x16x16xbf16>, vector<1x16x16xbf16>, vector<1x16x16xbf16>, vector<1x16x16xbf16>, vector<1x16x16xbf16>, vector<1x16x16xbf16>, vector<1x16x16xbf16>, vector<1x16x16xbf16> -> vector<8x16x16xbf16>
    %31 = vector.extract_strided_slice %11 {offsets = [0, 0], sizes = [16, 16], strides = [1, 1]} : vector<16x128xbf16> to vector<16x16xbf16>
    %32 = vector.extract_strided_slice %11 {offsets = [0, 16], sizes = [16, 16], strides = [1, 1]} : vector<16x128xbf16> to vector<16x16xbf16>
    %33 = vector.extract_strided_slice %11 {offsets = [0, 32], sizes = [16, 16], strides = [1, 1]} : vector<16x128xbf16> to vector<16x16xbf16>
    %34 = vector.extract_strided_slice %11 {offsets = [0, 48], sizes = [16, 16], strides = [1, 1]} : vector<16x128xbf16> to vector<16x16xbf16>
    %35 = vector.extract_strided_slice %11 {offsets = [0, 64], sizes = [16, 16], strides = [1, 1]} : vector<16x128xbf16> to vector<16x16xbf16>
    %36 = vector.extract_strided_slice %11 {offsets = [0, 80], sizes = [16, 16], strides = [1, 1]} : vector<16x128xbf16> to vector<16x16xbf16>
    %37 = vector.extract_strided_slice %11 {offsets = [0, 96], sizes = [16, 16], strides = [1, 1]} : vector<16x128xbf16> to vector<16x16xbf16>
    %38 = vector.extract_strided_slice %11 {offsets = [0, 112], sizes = [16, 16], strides = [1, 1]} : vector<16x128xbf16> to vector<16x16xbf16>
    %39 = vector.shape_cast %31 : vector<16x16xbf16> to vector<1x16x16xbf16>
    %40 = vector.shape_cast %32 : vector<16x16xbf16> to vector<1x16x16xbf16>
    %41 = vector.shape_cast %33 : vector<16x16xbf16> to vector<1x16x16xbf16>
    %42 = vector.shape_cast %34 : vector<16x16xbf16> to vector<1x16x16xbf16>
    %43 = vector.shape_cast %35 : vector<16x16xbf16> to vector<1x16x16xbf16>
    %44 = vector.shape_cast %36 : vector<16x16xbf16> to vector<1x16x16xbf16>
    %45 = vector.shape_cast %37 : vector<16x16xbf16> to vector<1x16x16xbf16>
    %46 = vector.shape_cast %38 : vector<16x16xbf16> to vector<1x16x16xbf16>
    %47 = tpu.concatenate %39, %40, %41, %42, %43, %44, %45, %46 in 0 : vector<1x16x16xbf16>, vector<1x16x16xbf16>, vector<1x16x16xbf16>, vector<1x16x16xbf16>, vector<1x16x16xbf16>, vector<1x16x16xbf16>, vector<1x16x16xbf16>, vector<1x16x16xbf16> -> vector<8x16x16xbf16>
    %48 = vector.extract_strided_slice %13 {offsets = [0, 0], sizes = [16, 16], strides = [1, 1]} : vector<16x128xbf16> to vector<16x16xbf16>
    %49 = vector.extract_strided_slice %13 {offsets = [0, 16], sizes = [16, 16], strides = [1, 1]} : vector<16x128xbf16> to vector<16x16xbf16>
    %50 = vector.extract_strided_slice %13 {offsets = [0, 32], sizes = [16, 16], strides = [1, 1]} : vector<16x128xbf16> to vector<16x16xbf16>
    %51 = vector.extract_strided_slice %13 {offsets = [0, 48], sizes = [16, 16], strides = [1, 1]} : vector<16x128xbf16> to vector<16x16xbf16>
    %52 = vector.extract_strided_slice %13 {offsets = [0, 64], sizes = [16, 16], strides = [1, 1]} : vector<16x128xbf16> to vector<16x16xbf16>
    %53 = vector.extract_strided_slice %13 {offsets = [0, 80], sizes = [16, 16], strides = [1, 1]} : vector<16x128xbf16> to vector<16x16xbf16>
    %54 = vector.extract_strided_slice %13 {offsets = [0, 96], sizes = [16, 16], strides = [1, 1]} : vector<16x128xbf16> to vector<16x16xbf16>
    %55 = vector.extract_strided_slice %13 {offsets = [0, 112], sizes = [16, 16], strides = [1, 1]} : vector<16x128xbf16> to vector<16x16xbf16>
    %56 = vector.shape_cast %48 : vector<16x16xbf16> to vector<1x16x16xbf16>
    %57 = vector.shape_cast %49 : vector<16x16xbf16> to vector<1x16x16xbf16>
    %58 = vector.shape_cast %50 : vector<16x16xbf16> to vector<1x16x16xbf16>
    %59 = vector.shape_cast %51 : vector<16x16xbf16> to vector<1x16x16xbf16>
    %60 = vector.shape_cast %52 : vector<16x16xbf16> to vector<1x16x16xbf16>
    %61 = vector.shape_cast %53 : vector<16x16xbf16> to vector<1x16x16xbf16>
    %62 = vector.shape_cast %54 : vector<16x16xbf16> to vector<1x16x16xbf16>
    %63 = vector.shape_cast %55 : vector<16x16xbf16> to vector<1x16x16xbf16>
    %64 = tpu.concatenate %56, %57, %58, %59, %60, %61, %62, %63 in 0 : vector<1x16x16xbf16>, vector<1x16x16xbf16>, vector<1x16x16xbf16>, vector<1x16x16xbf16>, vector<1x16x16xbf16>, vector<1x16x16xbf16>, vector<1x16x16xbf16>, vector<1x16x16xbf16> -> vector<8x16x16xbf16>
    "tpu.trace_start"() <{level = 10 : i32, message = "gqd,gkd->gqk"}> : () -> ()
    %cst_6 = arith.constant dense<0.000000e+00> : vector<8x16x16xf32>
    %65 = tpu.matmul %30, %47, %cst_6 {dimension_numbers = #tpu.dot_dimension_numbers<[2], [2], [1], [1], [0, 0, 0, 1, 1, 1], [0], [0]>} : vector<8x16x16xbf16>, vector<8x16x16xbf16>, vector<8x16x16xf32> -> vector<8x16x16xf32>
    "tpu.trace_stop"() : () -> ()
    %cst_7 = arith.constant dense<0xFF800000> : vector<8x16xf32>
    %66 = vector.multi_reduction <maximumf>, %65, %cst_7 [2] : vector<8x16x16xf32> to vector<8x16xf32>
    %67 = vector.shape_cast %66 : vector<8x16xf32> to vector<8x16x1xf32>
    %68 = vector.broadcast %67 : vector<8x16x1xf32> to vector<8x16x16xf32>
    %69 = arith.subf %65, %68 : vector<8x16x16xf32>
    %70 = math.exp %69 : vector<8x16x16xf32>
    %cst_8 = arith.constant dense<0.000000e+00> : vector<8x16xf32>
    %71 = vector.multi_reduction <add>, %70, %cst_8 [2] : vector<8x16x16xf32> to vector<8x16xf32>
    %72 = vector.shape_cast %71 : vector<8x16xf32> to vector<8x16x1xf32>
    %73 = arith.truncf %70 : vector<8x16x16xf32> to vector<8x16x16xbf16>
    "tpu.trace_start"() <{level = 10 : i32, message = "gqk,gkd->gqd"}> : () -> ()
    %cst_9 = arith.constant dense<0.000000e+00> : vector<8x16x16xf32>
    %74 = tpu.matmul %73, %64, %cst_9 {dimension_numbers = #tpu.dot_dimension_numbers<[2], [1], [1], [2], [0, 0, 0, 1, 1, 2], [0], [0]>} : vector<8x16x16xbf16>, vector<8x16x16xbf16>, vector<8x16x16xf32> -> vector<8x16x16xf32>
    "tpu.trace_stop"() : () -> ()
    %75 = tpu.reciprocal %72 {approx = true} : vector<8x16x1xf32> -> vector<8x16x1xf32>
    %76 = vector.broadcast %75 : vector<8x16x1xf32> to vector<8x16x16xf32>
    %77 = arith.mulf %74, %76 : vector<8x16x16xf32>
    %78 = vector.extract_strided_slice %77 {offsets = [0, 0, 0], sizes = [1, 16, 16], strides = [1, 1, 1]} : vector<8x16x16xf32> to vector<1x16x16xf32>
    %79 = vector.shape_cast %78 : vector<1x16x16xf32> to vector<16x16xf32>
    %80 = vector.extract_strided_slice %77 {offsets = [1, 0, 0], sizes = [1, 16, 16], strides = [1, 1, 1]} : vector<8x16x16xf32> to vector<1x16x16xf32>
    %81 = vector.shape_cast %80 : vector<1x16x16xf32> to vector<16x16xf32>
    %82 = vector.extract_strided_slice %77 {offsets = [2, 0, 0], sizes = [1, 16, 16], strides = [1, 1, 1]} : vector<8x16x16xf32> to vector<1x16x16xf32>
    %83 = vector.shape_cast %82 : vector<1x16x16xf32> to vector<16x16xf32>
    %84 = vector.extract_strided_slice %77 {offsets = [3, 0, 0], sizes = [1, 16, 16], strides = [1, 1, 1]} : vector<8x16x16xf32> to vector<1x16x16xf32>
    %85 = vector.shape_cast %84 : vector<1x16x16xf32> to vector<16x16xf32>
    %86 = vector.extract_strided_slice %77 {offsets = [4, 0, 0], sizes = [1, 16, 16], strides = [1, 1, 1]} : vector<8x16x16xf32> to vector<1x16x16xf32>
    %87 = vector.shape_cast %86 : vector<1x16x16xf32> to vector<16x16xf32>
    %88 = vector.extract_strided_slice %77 {offsets = [5, 0, 0], sizes = [1, 16, 16], strides = [1, 1, 1]} : vector<8x16x16xf32> to vector<1x16x16xf32>
    %89 = vector.shape_cast %88 : vector<1x16x16xf32> to vector<16x16xf32>
    %90 = vector.extract_strided_slice %77 {offsets = [6, 0, 0], sizes = [1, 16, 16], strides = [1, 1, 1]} : vector<8x16x16xf32> to vector<1x16x16xf32>
    %91 = vector.shape_cast %90 : vector<1x16x16xf32> to vector<16x16xf32>
    %92 = vector.extract_strided_slice %77 {offsets = [7, 0, 0], sizes = [1, 16, 16], strides = [1, 1, 1]} : vector<8x16x16xf32> to vector<1x16x16xf32>
    %93 = vector.shape_cast %92 : vector<1x16x16xf32> to vector<16x16xf32>
    %94 = tpu.concatenate %79, %81, %83, %85, %87, %89, %91, %93 in 1 : vector<16x16xf32>, vector<16x16xf32>, vector<16x16xf32>, vector<16x16xf32>, vector<16x16xf32>, vector<16x16xf32>, vector<16x16xf32>, vector<16x16xf32> -> vector<16x128xf32>
    %95 = arith.truncf %94 : vector<16x128xf32> to vector<16x128xbf16>
    %c0_10 = arith.constant 0 : index
    %c0_11 = arith.constant 0 : index
    %96 = vector.load %arg4[%c0_10, %c0_11] : memref<128x128xbf16, #tpu.memory_space<vmem>>, vector<128x128xbf16>
    %cst_12 = arith.constant dense<0.000000e+00> : vector<16x128xf32>
    %97 = tpu.matmul %95, %96, %cst_12 {dimension_numbers = #tpu.dot_dimension_numbers<[1], [0], [0], [1], [0, 0, 1, 1], [], []>} : vector<16x128xbf16>, vector<128x128xbf16>, vector<16x128xf32> -> vector<16x128xf32>
    %c0_13 = arith.constant 0 : index
    %c0_14 = arith.constant 0 : index
    %98 = vector.load %arg5[%c0_13, %c0_14] : memref<1x128xf32, #tpu.memory_space<vmem>>, vector<1x128xf32>
    %99 = vector.broadcast %98 : vector<1x128xf32> to vector<16x128xf32>
    %100 = arith.addf %97, %99 : vector<16x128xf32>
    %c0_15 = arith.constant 0 : index
    %c0_16 = arith.constant 0 : index
    %101 = vector.load %arg6[%c0_15, %c0_16] : memref<1x128xf32, #tpu.memory_space<vmem>>, vector<1x128xf32>
    %c0_17 = arith.constant 0 : index
    %c0_18 = arith.constant 0 : index
    %102 = vector.load %arg7[%c0_17, %c0_18] : memref<1x128xf32, #tpu.memory_space<vmem>>, vector<1x128xf32>
    %cst_19 = arith.constant dense<0.000000e+00> : vector<16xf32>
    %103 = vector.multi_reduction <add>, %100, %cst_19 [1] : vector<16x128xf32> to vector<16xf32>
    %104 = vector.shape_cast %103 : vector<16xf32> to vector<16x1xf32>
    %cst_20 = arith.constant 1.280000e+02 : f32
    %105 = vector.broadcast %cst_20 : f32 to vector<16x1xf32>
    %106 = arith.divf %104, %105 : vector<16x1xf32>
    %107 = vector.broadcast %106 : vector<16x1xf32> to vector<16x128xf32>
    %108 = arith.subf %100, %107 : vector<16x128xf32>
    %109 = arith.mulf %108, %108 : vector<16x128xf32>
    %cst_21 = arith.constant dense<0.000000e+00> : vector<16xf32>
    %110 = vector.multi_reduction <add>, %109, %cst_21 [1] : vector<16x128xf32> to vector<16xf32>
    %111 = vector.shape_cast %110 : vector<16xf32> to vector<16x1xf32>
    %cst_22 = arith.constant 1.280000e+02 : f32
    %112 = vector.broadcast %cst_22 : f32 to vector<16x1xf32>
    %113 = arith.divf %111, %112 : vector<16x1xf32>
    %114 = vector.broadcast %106 : vector<16x1xf32> to vector<16x128xf32>
    %115 = arith.subf %100, %114 : vector<16x128xf32>
    %cst_23 = arith.constant 9.99999974E-6 : f32
    %116 = vector.broadcast %cst_23 : f32 to vector<16x1xf32>
    %117 = arith.addf %113, %116 : vector<16x1xf32>
    %118 = math.rsqrt %117 : vector<16x1xf32>
    %119 = vector.broadcast %118 : vector<16x1xf32> to vector<16x128xf32>
    %120 = arith.mulf %115, %119 : vector<16x128xf32>
    %121 = vector.broadcast %101 : vector<1x128xf32> to vector<16x128xf32>
    %122 = arith.mulf %120, %121 : vector<16x128xf32>
    %123 = vector.broadcast %102 : vector<1x128xf32> to vector<16x128xf32>
    %124 = arith.addf %122, %123 : vector<16x128xf32>
    %cst_24 = arith.constant 0.000000e+00 : f32
    %125 = vector.broadcast %cst_24 : f32 to vector<16x128xf32>
    %126 = arith.maximumf %124, %125 : vector<16x128xf32>
    %127 = arith.addf %1, %126 : vector<16x128xf32>
    %128 = arith.truncf %127 : vector<16x128xf32> to vector<16x128xbf16>
    %c0_25 = arith.constant 0 : index
    %c0_26 = arith.constant 0 : index
    %129 = vector.load %arg8[%c0_25, %c0_26] : memref<128x256xbf16, #tpu.memory_space<vmem>>, vector<128x256xbf16>
    %cst_27 = arith.constant dense<0.000000e+00> : vector<16x256xf32>
    %130 = tpu.matmul %128, %129, %cst_27 {dimension_numbers = #tpu.dot_dimension_numbers<[1], [0], [0], [1], [0, 0, 1, 1], [], []>} : vector<16x128xbf16>, vector<128x256xbf16>, vector<16x256xf32> -> vector<16x256xf32>
    %c0_28 = arith.constant 0 : index
    %c0_29 = arith.constant 0 : index
    %131 = vector.load %arg9[%c0_28, %c0_29] : memref<1x256xf32, #tpu.memory_space<vmem>>, vector<1x256xf32>
    %132 = vector.broadcast %131 : vector<1x256xf32> to vector<16x256xf32>
    %133 = arith.addf %130, %132 : vector<16x256xf32>
    %cst_30 = arith.constant 0.000000e+00 : f32
    %134 = vector.broadcast %cst_30 : f32 to vector<16x256xf32>
    %135 = arith.maximumf %133, %134 : vector<16x256xf32>
    %136 = arith.truncf %135 : vector<16x256xf32> to vector<16x256xbf16>
    %c0_31 = arith.constant 0 : index
    %c0_32 = arith.constant 0 : index
    %137 = vector.load %arg10[%c0_31, %c0_32] : memref<256x128xbf16, #tpu.memory_space<vmem>>, vector<256x128xbf16>
    %cst_33 = arith.constant dense<0.000000e+00> : vector<16x128xf32>
    %138 = tpu.matmul %136, %137, %cst_33 {dimension_numbers = #tpu.dot_dimension_numbers<[1], [0], [0], [1], [0, 0, 1, 1], [], []>} : vector<16x256xbf16>, vector<256x128xbf16>, vector<16x128xf32> -> vector<16x128xf32>
    %c0_34 = arith.constant 0 : index
    %c0_35 = arith.constant 0 : index
    %139 = vector.load %arg11[%c0_34, %c0_35] : memref<1x128xf32, #tpu.memory_space<vmem>>, vector<1x128xf32>
    %140 = vector.broadcast %139 : vector<1x128xf32> to vector<16x128xf32>
    %141 = arith.addf %138, %140 : vector<16x128xf32>
    %c0_36 = arith.constant 0 : index
    %c0_37 = arith.constant 0 : index
    %142 = vector.load %arg12[%c0_36, %c0_37] : memref<1x128xf32, #tpu.memory_space<vmem>>, vector<1x128xf32>
    %c0_38 = arith.constant 0 : index
    %c0_39 = arith.constant 0 : index
    %143 = vector.load %arg13[%c0_38, %c0_39] : memref<1x128xf32, #tpu.memory_space<vmem>>, vector<1x128xf32>
    %cst_40 = arith.constant dense<0.000000e+00> : vector<16xf32>
    %144 = vector.multi_reduction <add>, %141, %cst_40 [1] : vector<16x128xf32> to vector<16xf32>
    %145 = vector.shape_cast %144 : vector<16xf32> to vector<16x1xf32>
    %cst_41 = arith.constant 1.280000e+02 : f32
    %146 = vector.broadcast %cst_41 : f32 to vector<16x1xf32>
    %147 = arith.divf %145, %146 : vector<16x1xf32>
    %148 = vector.broadcast %147 : vector<16x1xf32> to vector<16x128xf32>
    %149 = arith.subf %141, %148 : vector<16x128xf32>
    %150 = arith.mulf %149, %149 : vector<16x128xf32>
    %cst_42 = arith.constant dense<0.000000e+00> : vector<16xf32>
    %151 = vector.multi_reduction <add>, %150, %cst_42 [1] : vector<16x128xf32> to vector<16xf32>
    %152 = vector.shape_cast %151 : vector<16xf32> to vector<16x1xf32>
    %cst_43 = arith.constant 1.280000e+02 : f32
    %153 = vector.broadcast %cst_43 : f32 to vector<16x1xf32>
    %154 = arith.divf %152, %153 : vector<16x1xf32>
    %155 = vector.broadcast %147 : vector<16x1xf32> to vector<16x128xf32>
    %156 = arith.subf %141, %155 : vector<16x128xf32>
    %cst_44 = arith.constant 9.99999974E-6 : f32
    %157 = vector.broadcast %cst_44 : f32 to vector<16x1xf32>
    %158 = arith.addf %154, %157 : vector<16x1xf32>
    %159 = math.rsqrt %158 : vector<16x1xf32>
    %160 = vector.broadcast %159 : vector<16x1xf32> to vector<16x128xf32>
    %161 = arith.mulf %156, %160 : vector<16x128xf32>
    %162 = vector.broadcast %142 : vector<1x128xf32> to vector<16x128xf32>
    %163 = arith.mulf %161, %162 : vector<16x128xf32>
    %164 = vector.broadcast %143 : vector<1x128xf32> to vector<16x128xf32>
    %165 = arith.addf %163, %164 : vector<16x128xf32>
    %cst_45 = arith.constant 0.000000e+00 : f32
    %166 = vector.broadcast %cst_45 : f32 to vector<16x128xf32>
    %167 = arith.maximumf %165, %166 : vector<16x128xf32>
    %168 = arith.addf %127, %167 : vector<16x128xf32>
    %169 = vector.shape_cast %168 : vector<16x128xf32> to vector<1x16x128xf32>
    %c0_46 = arith.constant 0 : index
    %c0_47 = arith.constant 0 : index
    %c0_48 = arith.constant 0 : index
    %170 = vector.load %arg14[%c0_46, %c0_47, %c0_48] : memref<1x16x128xf32, #tpu.memory_space<vmem>>, vector<1x16x128xf32>
    tpu.vector_store %arg14[%c0_46, %c0_47, %c0_48], %169 {strides = array<i32>} : memref<1x16x128xf32, #tpu.memory_space<vmem>>, vector<1x16x128xf32>,
    return
  }
  func.func @transform_0(%arg0: i32) -> (i32, i32, i32) {
    %c0_i32 = arith.constant 0 : i32
    %c0_i32_0 = arith.constant 0 : i32
    %c0_i32_1 = arith.constant 0 : i32
    return %arg0, %c0_i32, %c0_i32_0 : i32, i32, i32
  }
  func.func @transform_1(%arg0: i32) -> (i32, i32) {
    %c0_i32 = arith.constant 0 : i32
    %c0_i32_0 = arith.constant 0 : i32
    %c0_i32_1 = arith.constant 0 : i32
    return %c0_i32, %c0_i32_0 : i32, i32
  }
  func.func @transform_2(%arg0: i32) -> (i32, i32) {
    %c0_i32 = arith.constant 0 : i32
    %c0_i32_0 = arith.constant 0 : i32
    %c0_i32_1 = arith.constant 0 : i32
    return %c0_i32, %c0_i32_0 : i32, i32
  }
  func.func @transform_3(%arg0: i32) -> (i32, i32) {
    %c0_i32 = arith.constant 0 : i32
    %c0_i32_0 = arith.constant 0 : i32
    %c0_i32_1 = arith.constant 0 : i32
    return %c0_i32, %c0_i32_0 : i32, i32
  }
  func.func @transform_4(%arg0: i32) -> (i32, i32) {
    %c0_i32 = arith.constant 0 : i32
    %c0_i32_0 = arith.constant 0 : i32
    %c0_i32_1 = arith.constant 0 : i32
    return %c0_i32, %c0_i32_0 : i32, i32
  }
  func.func @transform_5(%arg0: i32) -> (i32, i32) {
    %c0_i32 = arith.constant 0 : i32
    %c0_i32_0 = arith.constant 0 : i32
    %c0_i32_1 = arith.constant 0 : i32
    return %c0_i32, %c0_i32_0 : i32, i32
  }
  func.func @transform_6(%arg0: i32) -> (i32, i32) {
    %c0_i32 = arith.constant 0 : i32
    %c0_i32_0 = arith.constant 0 : i32
    %c0_i32_1 = arith.constant 0 : i32
    return %c0_i32, %c0_i32_0 : i32, i32
  }
  func.func @transform_7(%arg0: i32) -> (i32, i32) {
    %c0_i32 = arith.constant 0 : i32
    %c0_i32_0 = arith.constant 0 : i32
    %c0_i32_1 = arith.constant 0 : i32
    return %c0_i32, %c0_i32_0 : i32, i32
  }
  func.func @transform_8(%arg0: i32) -> (i32, i32) {
    %c0_i32 = arith.constant 0 : i32
    %c0_i32_0 = arith.constant 0 : i32
    %c0_i32_1 = arith.constant 0 : i32
    return %c0_i32, %c0_i32_0 : i32, i32
  }
  func.func @transform_9(%arg0: i32) -> (i32, i32) {
    %c0_i32 = arith.constant 0 : i32
    %c0_i32_0 = arith.constant 0 : i32
    %c0_i32_1 = arith.constant 0 : i32
    return %c0_i32, %c0_i32_0 : i32, i32
  }
  func.func @transform_10(%arg0: i32) -> (i32, i32) {
    %c0_i32 = arith.constant 0 : i32
    %c0_i32_0 = arith.constant 0 : i32
    %c0_i32_1 = arith.constant 0 : i32
    return %c0_i32, %c0_i32_0 : i32, i32
  }
  func.func @transform_11(%arg0: i32) -> (i32, i32) {
    %c0_i32 = arith.constant 0 : i32
    %c0_i32_0 = arith.constant 0 : i32
    %c0_i32_1 = arith.constant 0 : i32
    return %c0_i32, %c0_i32_0 : i32, i32
  }
  func.func @transform_12(%arg0: i32) -> (i32, i32) {
    %c0_i32 = arith.constant 0 : i32
    %c0_i32_0 = arith.constant 0 : i32
    %c0_i32_1 = arith.constant 0 : i32
    return %c0_i32, %c0_i32_0 : i32, i32
  }
  func.func @transform_13(%arg0: i32) -> (i32, i32, i32) {
    %c0_i32 = arith.constant 0 : i32
    %c0_i32_0 = arith.constant 0 : i32
    %c0_i32_1 = arith.constant 0 : i32
    return %arg0, %c0_i32, %c0_i32_0 : i32, i32, i32
  }
}

</mosaic_0001>

<llo_original>
// kernel: tpu_custom_call.1
$region0: #{tpu_custom_call.1}
  #allocation0 [shape = 'u32[]', space=smem, size = 0x4, offset = 0x4, fixed_abs, tag = 'smem constant byte address 0x4 - core index']
  #allocation1 [shape = 'u32[144,128]{1,0:T(1,128)}', space=vmem, size = 0x12000, scoped, tag = 'internal scratch']
  %s0 = inlined_call_operand.hbm [shape: f32[2,16,128], index: 0, kind: input, shape index: {}]
  %s1 = inlined_call_operand.hbm [shape: bf16[128,384], index: 1, kind: input, shape index: {}]
  %s2 = inlined_call_operand.vmem [shape: f32[1,384], index: 2, kind: input, shape index: {}]
  %s3 = inlined_call_operand.hbm [shape: bf16[128,128], index: 3, kind: input, shape index: {}]
  %s4 = inlined_call_operand.vmem [shape: f32[1,128], index: 4, kind: input, shape index: {}]
  %s5 = inlined_call_operand.vmem [shape: f32[1,128], index: 5, kind: input, shape index: {}]
  %s6 = inlined_call_operand.vmem [shape: f32[1,128], index: 6, kind: input, shape index: {}]
  %s7 = inlined_call_operand.hbm [shape: bf16[128,256], index: 7, kind: input, shape index: {}]
  %s8 = inlined_call_operand.vmem [shape: f32[1,256], index: 8, kind: input, shape index: {}]
  %s9 = inlined_call_operand.hbm [shape: bf16[256,128], index: 9, kind: input, shape index: {}]
  %s10 = inlined_call_operand.vmem [shape: f32[1,128], index: 10, kind: input, shape index: {}]
  %s11 = inlined_call_operand.vmem [shape: f32[1,128], index: 11, kind: input, shape index: {}]
  %s12 = inlined_call_operand.vmem [shape: f32[1,128], index: 12, kind: input, shape index: {}]
  %s13 = inlined_call_operand.hbm [shape: f32[2,16,128], index: 13, kind: output, shape index: {}]
  %s14 = sld [smem:[#allocation0]]
  $region105: #{tpu_custom_call.1} parent=0
    _
  %s16 = ssub.s32 1, %s14
  %s17 = scalar_select 0, %s16, %s14
  $region1: #{tpu_custom_call.1} parent=0
    #allocation2 [shape = 'u8[16384]{0}', space=vmem, size = 0x4000, scoped, tag = 'input window, operand 0']
    #allocation3 [shape = 's32[2]{0}', space=sflag, size = 0x8, scoped, tag = 'scoped memory for tpu_custom_call.1']
    #allocation4 [shape = 's32[2]{0}', space=sflag, size = 0x8, scoped, tag = 'scoped memory for tpu_custom_call.1']
    #allocation5 [shape = 'u8[98304]{0}', space=vmem, size = 0x18000, scoped, tag = 'input window, operand 1, single buffered']
    #allocation6 [shape = 's32[1]{0}', space=sflag, size = 0x4, scoped, tag = 'scoped memory for tpu_custom_call.1']
    #allocation7 [shape = 'u8[32768]{0}', space=vmem, size = 0x8000, scoped, tag = 'input window, operand 3, single buffered']
    #allocation8 [shape = 'u8[65536]{0}', space=vmem, size = 0x10000, scoped, tag = 'input window, operand 7, single buffered']
    #allocation9 [shape = 's32[1]{0}', space=sflag, size = 0x4, scoped, tag = 'scoped memory for tpu_custom_call.1']
    #allocation10 [shape = 'u8[65536]{0}', space=vmem, size = 0x10000, scoped, tag = 'input window, operand 9, single buffered']
    #allocation11 [shape = 'u8[16384]{0}', space=vmem, size = 0x4000, scoped, tag = 'output window, operand 0']
    %18 = vsyncpa [#allocation3], 0
    %s19 = scalar_lea.sflag [#allocation3], 1
    %20 = vsyncpa %s19, 0
    %21 = vsyncpa [#allocation6], 0
    %22 = vsyncpa [#allocation9], 0
    %23 = vsyncpa [#allocation4], 0
    %s24 = scalar_lea.sflag [#allocation4], 1
    %25 = vsyncpa %s24, 0
    loop: start=0, step=1, limit=4
    $region2: #{tpu_custom_call.1} parent=1 // loop_pre_header
      _
    $region3: #{tpu_custom_call.1} parent=1 // loop_header
      %s27 = sphi 0, %s31
      %p28 = scmp.ge.s32.totalorder %s27, 4
      %s37 = sphi 0, %s39
      %s40 = sphi 0, %s37
      %s41 = sphi 0, %s40
      %s57 = sphi 0, %s41
      %s61 = sphi 0, %s61
      %s63 = sphi 0, %s61
      %s64 = sphi 0, %s63
      %s78 = sphi 0, %s64
      %s82 = sphi 0, %s82
      %s84 = sphi 0, %s82
      %s85 = sphi 0, %s84
      %s99 = sphi 0, %s85
      %s103 = sphi 0, %s103
      %s105 = sphi 0, %s103
      %s106 = sphi 0, %s105
      %s120 = sphi 0, %s106
      %s124 = sphi 0, %s124
      %s126 = sphi 0, %s124
      %s127 = sphi 0, %s126
      %s141 = sphi 0, %s127
      %s145 = sphi 0, %s145
      %s147 = sphi 0, %s145
      %s148 = sphi 0, %s147
      %s162 = sphi 0, %s148
      %s166 = sphi 0, %s166
      %s168 = sphi 0, %s166
      %s169 = sphi 0, %s168
      %s183 = sphi 0, %s169
      %s187 = sphi 0, %s187
      %s189 = sphi 0, %s187
      %s190 = sphi 0, %s189
      %s204 = sphi 0, %s190
      %s208 = sphi 0, %s208
      %s210 = sphi 0, %s208
      %s211 = sphi 0, %s210
      %s225 = sphi 0, %s211
      %s229 = sphi 0, %s229
      %s231 = sphi 0, %s229
      %s232 = sphi 0, %s231
      %s246 = sphi 0, %s232
      %s250 = sphi 0, %s250
      %s252 = sphi 0, %s250
      %s253 = sphi 0, %s252
      %s267 = sphi 0, %s253
      %s271 = sphi 0, %s271
      %s273 = sphi 0, %s271
      %s274 = sphi 0, %s273
      %s288 = sphi 0, %s274
      %s292 = sphi 0, %s292
      %s294 = sphi 0, %s292
      %s295 = sphi 0, %s294
      %s309 = sphi 0, %s295
      %s315 = sphi 0, %s317
      %s318 = sphi 0, %s315
      %s319 = sphi 0, %s318
      %s335 = sphi 0, %s319
    $region4: #{tpu_custom_call.1} parent=1 // loop_header_branch
      %30 = sbr.rel (%p28) target = $region8
    $region5: #{tpu_custom_call.1} parent=1 // loop_body
      %s32 = ssub.s32 %s27, 1
      %s33 = ssub.s32 %s27, 2
      %s34 = sadd.s32 %s27, 1
      %s35 = ssub.s32 %s27, %s34
      %p36 = scmp.eq.s32.totalorder %s35, 0
      %s38 = sadd.s32 %s37, 1
      %s39 = scalar_select %p36, %s37, %s38
      %p42 = pneg %p36
      %p43 = scmp.eq.s32.totalorder %s27, 1
      %p44 = por %p42, %p43
      %p45 = scmp.ne.s32.totalorder %s37, %s40
      %p46 = scmp.eq.s32.totalorder %s27, 0
      %p47 = por %p45, %p46
      %p48 = scmp.ne.s32.totalorder %s37, %s40
      %p49 = scmp.eq.s32.totalorder %s32, 1
      %p50 = por %p48, %p49
      %p51 = scmp.ne.s32.totalorder %s40, %s41
      %p52 = scmp.eq.s32.totalorder %s32, 0
      %p53 = por %p51, %p52
      %p54 = scmp.ne.s32.totalorder %s40, %s41
      %p55 = scmp.eq.s32.totalorder %s33, 1
      %p56 = por %p54, %p55
      %p58 = scmp.ne.s32.totalorder %s41, %s57
      %p59 = scmp.eq.s32.totalorder %s33, 0
      %p60 = por %p58, %p59
      %s62 = sadd.s32 %s61, 1
      %p65 = scmp.eq.s32.totalorder %s27, 1
      %p66 = scmp.ne.s32.totalorder %s61, %s63
      %p67 = scmp.eq.s32.totalorder %s27, 0
      %p68 = por %p66, %p67
      %p69 = scmp.ne.s32.totalorder %s61, %s63
      %p70 = scmp.eq.s32.totalorder %s32, 1
      %p71 = por %p69, %p70
      %p72 = scmp.ne.s32.totalorder %s63, %s64
      %p73 = scmp.eq.s32.totalorder %s32, 0
      %p74 = por %p72, %p73
      %p75 = scmp.ne.s32.totalorder %s63, %s64
      %p76 = scmp.eq.s32.totalorder %s33, 1
      %p77 = por %p75, %p76
      %p79 = scmp.ne.s32.totalorder %s64, %s78
      %p80 = scmp.eq.s32.totalorder %s33, 0
      %p81 = por %p79, %p80
      %s83 = sadd.s32 %s82, 1
      %p86 = scmp.eq.s32.totalorder %s27, 1
      %p87 = scmp.ne.s32.totalorder %s82, %s84
      %p88 = scmp.eq.s32.totalorder %s27, 0
      %p89 = por %p87, %p88
      %p90 = scmp.ne.s32.totalorder %s82, %s84
      %p91 = scmp.eq.s32.totalorder %s32, 1
      %p92 = por %p90, %p91
      %p93 = scmp.ne.s32.totalorder %s84, %s85
      %p94 = scmp.eq.s32.totalorder %s32, 0
      %p95 = por %p93, %p94
      %p96 = scmp.ne.s32.totalorder %s84, %s85
      %p97 = scmp.eq.s32.totalorder %s33, 1
      %p98 = por %p96, %p97
      %p100 = scmp.ne.s32.totalorder %s85, %s99
      %p101 = scmp.eq.s32.totalorder %s33, 0
      %p102 = por %p100, %p101
      %s104 = sadd.s32 %s103, 1
      %p107 = scmp.eq.s32.totalorder %s27, 1
      %p108 = scmp.ne.s32.totalorder %s103, %s105
      %p109 = scmp.eq.s32.totalorder %s27, 0
      %p110 = por %p108, %p109
      %p111 = scmp.ne.s32.totalorder %s103, %s105
      %p112 = scmp.eq.s32.totalorder %s32, 1
      %p113 = por %p111, %p112
      %p114 = scmp.ne.s32.totalorder %s105, %s106
      %p115 = scmp.eq.s32.totalorder %s32, 0
      %p116 = por %p114, %p115
      %p117 = scmp.ne.s32.totalorder %s105, %s106
      %p118 = scmp.eq.s32.totalorder %s33, 1
      %p119 = por %p117, %p118
      %p121 = scmp.ne.s32.totalorder %s106, %s120
      %p122 = scmp.eq.s32.totalorder %s33, 0
      %p123 = por %p121, %p122
      %s125 = sadd.s32 %s124, 1
      %p128 = scmp.eq.s32.totalorder %s27, 1
      %p129 = scmp.ne.s32.totalorder %s124, %s126
      %p130 = scmp.eq.s32.totalorder %s27, 0
      %p131 = por %p129, %p130
      %p132 = scmp.ne.s32.totalorder %s124, %s126
      %p133 = scmp.eq.s32.totalorder %s32, 1
      %p134 = por %p132, %p133
      %p135 = scmp.ne.s32.totalorder %s126, %s127
      %p136 = scmp.eq.s32.totalorder %s32, 0
      %p137 = por %p135, %p136
      %p138 = scmp.ne.s32.totalorder %s126, %s127
      %p139 = scmp.eq.s32.totalorder %s33, 1
      %p140 = por %p138, %p139
      %p142 = scmp.ne.s32.totalorder %s127, %s141
      %p143 = scmp.eq.s32.totalorder %s33, 0
      %p144 = por %p142, %p143
      %s146 = sadd.s32 %s145, 1
      %p149 = scmp.eq.s32.totalorder %s27, 1
      %p150 = scmp.ne.s32.totalorder %s145, %s147
      %p151 = scmp.eq.s32.totalorder %s27, 0
      %p152 = por %p150, %p151
      %p153 = scmp.ne.s32.totalorder %s145, %s147
      %p154 = scmp.eq.s32.totalorder %s32, 1
      %p155 = por %p153, %p154
      %p156 = scmp.ne.s32.totalorder %s147, %s148
      %p157 = scmp.eq.s32.totalorder %s32, 0
      %p158 = por %p156, %p157
      %p159 = scmp.ne.s32.totalorder %s147, %s148
      %p160 = scmp.eq.s32.totalorder %s33, 1
      %p161 = por %p159, %p160
      %p163 = scmp.ne.s32.totalorder %s148, %s162
      %p164 = scmp.eq.s32.totalorder %s33, 0
      %p165 = por %p163, %p164
      %s167 = sadd.s32 %s166, 1
      %p170 = scmp.eq.s32.totalorder %s27, 1
      %p171 = scmp.ne.s32.totalorder %s166, %s168
      %p172 = scmp.eq.s32.totalorder %s27, 0
      %p173 = por %p171, %p172
      %p174 = scmp.ne.s32.totalorder %s166, %s168
      %p175 = scmp.eq.s32.totalorder %s32, 1
      %p176 = por %p174, %p175
      %p177 = scmp.ne.s32.totalorder %s168, %s169
      %p178 = scmp.eq.s32.totalorder %s32, 0
      %p179 = por %p177, %p178
      %p180 = scmp.ne.s32.totalorder %s168, %s169
      %p181 = scmp.eq.s32.totalorder %s33, 1
      %p182 = por %p180, %p181
      %p184 = scmp.ne.s32.totalorder %s169, %s183
      %p185 = scmp.eq.s32.totalorder %s33, 0
      %p186 = por %p184, %p185
      %s188 = sadd.s32 %s187, 1
      %p191 = scmp.eq.s32.totalorder %s27, 1
      %p192 = scmp.ne.s32.totalorder %s187, %s189
      %p193 = scmp.eq.s32.totalorder %s27, 0
      %p194 = por %p192, %p193
      %p195 = scmp.ne.s32.totalorder %s187, %s189
      %p196 = scmp.eq.s32.totalorder %s32, 1
      %p197 = por %p195, %p196
      %p198 = scmp.ne.s32.totalorder %s189, %s190
      %p199 = scmp.eq.s32.totalorder %s32, 0
      %p200 = por %p198, %p199
      %p201 = scmp.ne.s32.totalorder %s189, %s190
      %p202 = scmp.eq.s32.totalorder %s33, 1
      %p203 = por %p201, %p202
      %p205 = scmp.ne.s32.totalorder %s190, %s204
      %p206 = scmp.eq.s32.totalorder %s33, 0
      %p207 = por %p205, %p206
      %s209 = sadd.s32 %s208, 1
      %p212 = scmp.eq.s32.totalorder %s27, 1
      %p213 = scmp.ne.s32.totalorder %s208, %s210
      %p214 = scmp.eq.s32.totalorder %s27, 0
      %p215 = por %p213, %p214
      %p216 = scmp.ne.s32.totalorder %s208, %s210
      %p217 = scmp.eq.s32.totalorder %s32, 1
      %p218 = por %p216, %p217
      %p219 = scmp.ne.s32.totalorder %s210, %s211
      %p220 = scmp.eq.s32.totalorder %s32, 0
      %p221 = por %p219, %p220
      %p222 = scmp.ne.s32.totalorder %s210, %s211
      %p223 = scmp.eq.s32.totalorder %s33, 1
      %p224 = por %p222, %p223
      %p226 = scmp.ne.s32.totalorder %s211, %s225
      %p227 = scmp.eq.s32.totalorder %s33, 0
      %p228 = por %p226, %p227
      %s230 = sadd.s32 %s229, 1
      %p233 = scmp.eq.s32.totalorder %s27, 1
      %p234 = scmp.ne.s32.totalorder %s229, %s231
      %p235 = scmp.eq.s32.totalorder %s27, 0
      %p236 = por %p234, %p235
      %p237 = scmp.ne.s32.totalorder %s229, %s231
      %p238 = scmp.eq.s32.totalorder %s32, 1
      %p239 = por %p237, %p238
      %p240 = scmp.ne.s32.totalorder %s231, %s232
      %p241 = scmp.eq.s32.totalorder %s32, 0
      %p242 = por %p240, %p241
      %p243 = scmp.ne.s32.totalorder %s231, %s232
      %p244 = scmp.eq.s32.totalorder %s33, 1
      %p245 = por %p243, %p244
      %p247 = scmp.ne.s32.totalorder %s232, %s246
      %p248 = scmp.eq.s32.totalorder %s33, 0
      %p249 = por %p247, %p248
      %s251 = sadd.s32 %s250, 1
      %p254 = scmp.eq.s32.totalorder %s27, 1
      %p255 = scmp.ne.s32.totalorder %s250, %s252
      %p256 = scmp.eq.s32.totalorder %s27, 0
      %p257 = por %p255, %p256
      %p258 = scmp.ne.s32.totalorder %s250, %s252
      %p259 = scmp.eq.s32.totalorder %s32, 1
      %p260 = por %p258, %p259
      %p261 = scmp.ne.s32.totalorder %s252, %s253
      %p262 = scmp.eq.s32.totalorder %s32, 0
      %p263 = por %p261, %p262
      %p264 = scmp.ne.s32.totalorder %s252, %s253
      %p265 = scmp.eq.s32.totalorder %s33, 1
      %p266 = por %p264, %p265
      %p268 = scmp.ne.s32.totalorder %s253, %s267
      %p269 = scmp.eq.s32.totalorder %s33, 0
      %p270 = por %p268, %p269
      %s272 = sadd.s32 %s271, 1
      %p275 = scmp.eq.s32.totalorder %s27, 1
      %p276 = scmp.ne.s32.totalorder %s271, %s273
      %p277 = scmp.eq.s32.totalorder %s27, 0
      %p278 = por %p276, %p277
      %p279 = scmp.ne.s32.totalorder %s271, %s273
      %p280 = scmp.eq.s32.totalorder %s32, 1
      %p281 = por %p279, %p280
      %p282 = scmp.ne.s32.totalorder %s273, %s274
      %p283 = scmp.eq.s32.totalorder %s32, 0
      %p284 = por %p282, %p283
      %p285 = scmp.ne.s32.totalorder %s273, %s274
      %p286 = scmp.eq.s32.totalorder %s33, 1
      %p287 = por %p285, %p286
      %p289 = scmp.ne.s32.totalorder %s274, %s288
      %p290 = scmp.eq.s32.totalorder %s33, 0
      %p291 = por %p289, %p290
      %s293 = sadd.s32 %s292, 1
      %p296 = scmp.eq.s32.totalorder %s27, 1
      %p297 = scmp.ne.s32.totalorder %s292, %s294
      %p298 = scmp.eq.s32.totalorder %s27, 0
      %p299 = por %p297, %p298
      %p300 = scmp.ne.s32.totalorder %s292, %s294
      %p301 = scmp.eq.s32.totalorder %s32, 1
      %p302 = por %p300, %p301
      %p303 = scmp.ne.s32.totalorder %s294, %s295
      %p304 = scmp.eq.s32.totalorder %s32, 0
      %p305 = por %p303, %p304
      %p306 = scmp.ne.s32.totalorder %s294, %s295
      %p307 = scmp.eq.s32.totalorder %s33, 1
      %p308 = por %p306, %p307
      %p310 = scmp.ne.s32.totalorder %s295, %s309
      %p311 = scmp.eq.s32.totalorder %s33, 0
      %p312 = por %p310, %p311
      %s313 = ssub.s32 %s27, %s34
      %p314 = scmp.eq.s32.totalorder %s313, 0
      %s316 = sadd.s32 %s315, 1
      %s317 = scalar_select %p314, %s315, %s316
      %p320 = pneg %p314
      %p321 = scmp.eq.s32.totalorder %s27, 1
      %p322 = por %p320, %p321
      %p323 = scmp.ne.s32.totalorder %s315, %s318
      %p324 = scmp.eq.s32.totalorder %s27, 0
      %p325 = por %p323, %p324
      %p326 = scmp.ne.s32.totalorder %s315, %s318
      %p327 = scmp.eq.s32.totalorder %s32, 1
      %p328 = por %p326, %p327
      %p329 = scmp.ne.s32.totalorder %s318, %s319
      %p330 = scmp.eq.s32.totalorder %s32, 0
      %p331 = por %p329, %p330
      %p332 = scmp.ne.s32.totalorder %s318, %s319
      %p333 = scmp.eq.s32.totalorder %s33, 1
      %p334 = por %p332, %p333
      %p336 = scmp.ne.s32.totalorder %s319, %s335
      %p337 = scmp.eq.s32.totalorder %s33, 0
      %p338 = por %p336, %p337
      %p339 = scmp.le.s32.totalorder 1, %s27
      %p340 = scmp.lt.s32.totalorder %s27, 3
      %p341 = pnand %p339, %p340
      %p342 = pneg %p341
      // Predicated region
      $region9: #{tpu_custom_call.1} parent=5 // pred_check
        _
      $region10: #{tpu_custom_call.1} parent=5 // pred_check_branch
        %344 = sbr.rel (%p341) target = $region12
      $region11: #{tpu_custom_call.1} parent=5 // pred_region
        %s345 = ssub.s32 %s27, 1
        // Predicated region
        $region13: #{tpu_custom_call.1} parent=11 // pred_check
          %p346 = pneg %p74
        $region14: #{tpu_custom_call.1} parent=11 // pred_check_branch
          %348 = sbr.rel (%p346) target = $region16
        $region15: #{tpu_custom_call.1} parent=11 // pred_region
          %s350 = ssub.s32 3072, 3072
          %351 = vsyncadd [#allocation6], %s350
          %s352 = sshll.u32 [#allocation5], 4
          %s353 = int_to_ptr.vmem [resolvable:$true] %s352
          %358 = dma.hbm_to_vmem [thread:$0]  %s1, 3072, %s353, [#allocation6], 192, 192, 12
        $region16: #{tpu_custom_call.1} parent=11 // pred_fallthru
          _
        // Predicated region
        $region17: #{tpu_custom_call.1} parent=11 // pred_check
          %p359 = pneg %p95
        $region18: #{tpu_custom_call.1} parent=11 // pred_check_branch
          %361 = sbr.rel (%p359) target = $region20
        $region19: #{tpu_custom_call.1} parent=11 // pred_region
          _
        $region20: #{tpu_custom_call.1} parent=11 // pred_fallthru
          _
        // Predicated region
        $region21: #{tpu_custom_call.1} parent=11 // pred_check
          %p362 = pneg %p116
        $region22: #{tpu_custom_call.1} parent=11 // pred_check_branch
          %364 = sbr.rel (%p362) target = $region24
        $region23: #{tpu_custom_call.1} parent=11 // pred_region
          %s366 = ssub.s32 1024, 1024
          %367 = vsyncadd [#allocation6], %s366
          %s368 = sshll.u32 [#allocation7], 4
          %s369 = int_to_ptr.vmem [resolvable:$true] %s368
          %374 = dma.hbm_to_vmem [thread:$0]  %s3, 1024, %s369, [#allocation6], 64, 64, 4
        $region24: #{tpu_custom_call.1} parent=11 // pred_fallthru
          _
        // Predicated region
        $region25: #{tpu_custom_call.1} parent=11 // pred_check
          %p375 = pneg %p137
        $region26: #{tpu_custom_call.1} parent=11 // pred_check_branch
          %377 = sbr.rel (%p375) target = $region28
        $region27: #{tpu_custom_call.1} parent=11 // pred_region
          _
        $region28: #{tpu_custom_call.1} parent=11 // pred_fallthru
          _
        // Predicated region
        $region29: #{tpu_custom_call.1} parent=11 // pred_check
          %p378 = pneg %p158
        $region30: #{tpu_custom_call.1} parent=11 // pred_check_branch
          %380 = sbr.rel (%p378) target = $region32
        $region31: #{tpu_custom_call.1} parent=11 // pred_region
          _
        $region32: #{tpu_custom_call.1} parent=11 // pred_fallthru
          _
        // Predicated region
        $region33: #{tpu_custom_call.1} parent=11 // pred_check
          %p381 = pneg %p179
        $region34: #{tpu_custom_call.1} parent=11 // pred_check_branch
          %383 = sbr.rel (%p381) target = $region36
        $region35: #{tpu_custom_call.1} parent=11 // pred_region
          _
        $region36: #{tpu_custom_call.1} parent=11 // pred_fallthru
          _
        // Predicated region
        $region37: #{tpu_custom_call.1} parent=11 // pred_check
          %p384 = pneg %p200
        $region38: #{tpu_custom_call.1} parent=11 // pred_check_branch
          %386 = sbr.rel (%p384) target = $region40
        $region39: #{tpu_custom_call.1} parent=11 // pred_region
          %s388 = ssub.s32 2048, 2048
          %389 = vsyncadd [#allocation9], %s388
          %s390 = sshll.u32 [#allocation8], 4
          %s391 = int_to_ptr.vmem [resolvable:$true] %s390
          %396 = dma.hbm_to_vmem [thread:$0]  %s7, 2048, %s391, [#allocation9], 128, 128, 8
        $region40: #{tpu_custom_call.1} parent=11 // pred_fallthru
          _
        // Predicated region
        $region41: #{tpu_custom_call.1} parent=11 // pred_check
          %p397 = pneg %p221
        $region42: #{tpu_custom_call.1} parent=11 // pred_check_branch
          %399 = sbr.rel (%p397) target = $region44
        $region43: #{tpu_custom_call.1} parent=11 // pred_region
          _
        $region44: #{tpu_custom_call.1} parent=11 // pred_fallthru
          _
        // Predicated region
        $region45: #{tpu_custom_call.1} parent=11 // pred_check
          %p400 = pneg %p242
        $region46: #{tpu_custom_call.1} parent=11 // pred_check_branch
          %402 = sbr.rel (%p400) target = $region48
        $region47: #{tpu_custom_call.1} parent=11 // pred_region
          %s404 = ssub.s32 2048, 2048
          %405 = vsyncadd [#allocation9], %s404
          %s406 = sshll.u32 [#allocation10], 4
          %s407 = int_to_ptr.vmem [resolvable:$true] %s406
          %412 = dma.hbm_to_vmem [thread:$0]  %s9, 2048, %s407, [#allocation9], 64, 64, 4
        $region48: #{tpu_custom_call.1} parent=11 // pred_fallthru
          _
        // Predicated region
        $region49: #{tpu_custom_call.1} parent=11 // pred_check
          %p413 = pneg %p263
        $region50: #{tpu_custom_call.1} parent=11 // pred_check_branch
          %415 = sbr.rel (%p413) target = $region52
        $region51: #{tpu_custom_call.1} parent=11 // pred_region
          _
        $region52: #{tpu_custom_call.1} parent=11 // pred_fallthru
          _
        // Predicated region
        $region53: #{tpu_custom_call.1} parent=11 // pred_check
          %p416 = pneg %p284
        $region54: #{tpu_custom_call.1} parent=11 // pred_check_branch
          %418 = sbr.rel (%p416) target = $region56
        $region55: #{tpu_custom_call.1} parent=11 // pred_region
          _
        $region56: #{tpu_custom_call.1} parent=11 // pred_fallthru
          _
        // Predicated region
        $region57: #{tpu_custom_call.1} parent=11 // pred_check
          %p419 = pneg %p305
        $region58: #{tpu_custom_call.1} parent=11 // pred_check_branch
          %421 = sbr.rel (%p419) target = $region60
        $region59: #{tpu_custom_call.1} parent=11 // pred_region
          _
        $region60: #{tpu_custom_call.1} parent=11 // pred_fallthru
          _
      $region12: #{tpu_custom_call.1} parent=5 // pred_fallthru
        _
      %p422 = scmp.lt.s32.totalorder %s27, 2
      // Predicated region
      $region61: #{tpu_custom_call.1} parent=5 // pred_check
        %p423 = pneg %p422
      $region62: #{tpu_custom_call.1} parent=5 // pred_check_branch
        %425 = sbr.rel (%p423) target = $region64
      $region63: #{tpu_custom_call.1} parent=5 // pred_region
        // Predicated region
        $region65: #{tpu_custom_call.1} parent=63 // pred_check
          %p426 = pneg %p47
        $region66: #{tpu_custom_call.1} parent=63 // pred_check_branch
          %428 = sbr.rel (%p426) target = $region68
        $region67: #{tpu_custom_call.1} parent=63 // pred_region
          %s429 = sand.u32 %s37, 1
          %s430 = scalar_lea.sflag [#allocation3], %s429
          %s431 = sand.u32 %s37, 1
          %s432 = smul.addr %s431, 16
          %s433 = scalar_lea.vmem [#allocation2], %s432
          %s435 = ssub.s32 256, 256
          %436 = vsyncadd %s430, %s435
          %s437 = smul.addr %s27, 2
          %s438 = smul.addr %s437, 128
          %s439 = scalar_lea.hbm %s0, %s438
          %s440 = sshll.u32 %s433, 4
          %s441 = int_to_ptr.vmem [resolvable:$true] %s440
          %446 = dma.hbm_to_vmem [thread:$0]  %s439, 256, %s441, %s430, 128, 128, 8
        $region68: #{tpu_custom_call.1} parent=63 // pred_fallthru
          _
      $region64: #{tpu_custom_call.1} parent=5 // pred_fallthru
        _
      %p447 = scmp.le.s32.totalorder 1, %s27
      %p448 = scmp.lt.s32.totalorder %s27, 3
      %p449 = pnand %p447, %p448
      %p450 = pneg %p449
      // Predicated region
      $region69: #{tpu_custom_call.1} parent=5 // pred_check
        _
      $region70: #{tpu_custom_call.1} parent=5 // pred_check_branch
        %452 = sbr.rel (%p449) target = $region72
      $region71: #{tpu_custom_call.1} parent=5 // pred_region
        %s453 = ssub.s32 %s27, 1
        %s454 = sand.u32 %s40, 1
        %s455 = scalar_lea.sflag [#allocation3], %s454
        %s456 = sand.u32 %s40, 1
        %s457 = smul.addr %s456, 16
        %s458 = scalar_lea.vmem [#allocation2], %s457
        // Predicated region
        $region73: #{tpu_custom_call.1} parent=71 // pred_check
          %p459 = pneg %p53
        $region74: #{tpu_custom_call.1} parent=71 // pred_check_branch
          %461 = sbr.rel (%p459) target = $region76
        $region75: #{tpu_custom_call.1} parent=71 // pred_region
          %462 = dma.done %s455, 256
        $region76: #{tpu_custom_call.1} parent=71 // pred_fallthru
          _
        // Predicated region
        $region77: #{tpu_custom_call.1} parent=71 // pred_check
          %p463 = pneg %p74
        $region78: #{tpu_custom_call.1} parent=71 // pred_check_branch
          %465 = sbr.rel (%p463) target = $region80
        $region79: #{tpu_custom_call.1} parent=71 // pred_region
          %466 = dma.done [#allocation6], 3072
        $region80: #{tpu_custom_call.1} parent=71 // pred_fallthru
          _
        // Predicated region
        $region81: #{tpu_custom_call.1} parent=71 // pred_check
          %p467 = pneg %p116
        $region82: #{tpu_custom_call.1} parent=71 // pred_check_branch
          %469 = sbr.rel (%p467) target = $region84
        $region83: #{tpu_custom_call.1} parent=71 // pred_region
          %470 = dma.done [#allocation6], 1024
        $region84: #{tpu_custom_call.1} parent=71 // pred_fallthru
          _
        // Predicated region
        $region85: #{tpu_custom_call.1} parent=71 // pred_check
          %p471 = pneg %p200
        $region86: #{tpu_custom_call.1} parent=71 // pred_check_branch
          %473 = sbr.rel (%p471) target = $region88
        $region87: #{tpu_custom_call.1} parent=71 // pred_region
          %474 = dma.done [#allocation9], 2048
        $region88: #{tpu_custom_call.1} parent=71 // pred_fallthru
          _
        // Predicated region
        $region89: #{tpu_custom_call.1} parent=71 // pred_check
          %p475 = pneg %p242
        $region90: #{tpu_custom_call.1} parent=71 // pred_check_branch
          %477 = sbr.rel (%p475) target = $region92
        $region91: #{tpu_custom_call.1} parent=71 // pred_region
          %478 = dma.done [#allocation9], 2048
        $region92: #{tpu_custom_call.1} parent=71 // pred_fallthru
          _
        %s479 = sand.u32 %s40, 1
        %s480 = scalar_lea.sflag [#allocation3], %s479
        %s481 = sand.u32 %s40, 1
        %s482 = smul.addr %s481, 16
        %s483 = scalar_lea.vmem [#allocation2], %s482
        %p484 = pneg %p53
        %p485 = pneg %p50
        %p486 = pneg %p74
        %p487 = pneg %p71
        %p488 = pneg %p95
        %p489 = pneg %p92
        %p490 = pneg %p116
        %p491 = pneg %p113
        %p492 = pneg %p137
        %p493 = pneg %p134
        %p494 = pneg %p158
        %p495 = pneg %p155
        %p496 = pneg %p179
        %p497 = pneg %p176
        %p498 = pneg %p200
        %p499 = pneg %p197
        %p500 = pneg %p221
        %p501 = pneg %p218
        %p502 = pneg %p242
        %p503 = pneg %p239
        %p504 = pneg %p263
        %p505 = pneg %p260
        %p506 = pneg %p284
        %p507 = pneg %p281
        %p508 = pneg %p305
        %p509 = pneg %p302
        %p510 = pneg %p331
        %p511 = pneg %p328
        %s512 = sand.u32 %s318, 1
        %s513 = scalar_lea.sflag [#allocation4], %s512
        %s514 = sand.u32 %s318, 1
        %s515 = smul.addr %s514, 16
        %s516 = scalar_lea.vmem [#allocation11], %s515
        %v518 = vld [vmem:[%s458] sm:$0xff]
        %v519 = vld [vmem:[%s458 + $0x8] sm:$0xff]
        %v520 = vpack.c.bf16 %v519, %v518
        %v521 = vld [vmem:[#allocation5] sm:$0xff]
        %v522 = vld [vmem:[#allocation5 + $0x8] sm:$0xf]
        %v523 = vld [vmem:[#allocation5 + $0xc] sm:$0xff]
        %v524 = vld [vmem:[#allocation5 + $0x14] sm:$0xf]
        %v525 = vld [vmem:[#allocation5 + $0x18] sm:$0xff]
        %v526 = vld [vmem:[#allocation5 + $0x20] sm:$0xf]
        %v527 = vld [vmem:[#allocation5 + $0x24] sm:$0xff]
        %v528 = vld [vmem:[#allocation5 + $0x2c] sm:$0xf]
        %v529 = vld [vmem:[#allocation5 + $0x30] sm:$0xff]
        %v530 = vld [vmem:[#allocation5 + $0x38] sm:$0xf]
        %v531 = vld [vmem:[#allocation5 + $0x3c] sm:$0xff]
        %v532 = vld [vmem:[#allocation5 + $0x44] sm:$0xf]
        %v533 = vld [vmem:[#allocation5 + $0x48] sm:$0xff]
        %v534 = vld [vmem:[#allocation5 + $0x50] sm:$0xf]
        %v535 = vld [vmem:[#allocation5 + $0x54] sm:$0xff]
        %v536 = vld [vmem:[#allocation5 + $0x5c] sm:$0xf]
        %v537 = vld [vmem:[#allocation5 + $0x60] sm:$0xff]
        %v538 = vld [vmem:[#allocation5 + $0x68] sm:$0xf]
        %v539 = vld [vmem:[#allocation5 + $0x6c] sm:$0xff]
        %v540 = vld [vmem:[#allocation5 + $0x74] sm:$0xf]
        %v541 = vld [vmem:[#allocation5 + $0x78] sm:$0xff]
        %v542 = vld [vmem:[#allocation5 + $0x80] sm:$0xf]
        %v543 = vld [vmem:[#allocation5 + $0x84] sm:$0xff]
        %v544 = vld [vmem:[#allocation5 + $0x8c] sm:$0xf]
        %v545 = vld [vmem:[#allocation5 + $0x90] sm:$0xff]
        %v546 = vld [vmem:[#allocation5 + $0x98] sm:$0xf]
        %v547 = vld [vmem:[#allocation5 + $0x9c] sm:$0xff]
        %v548 = vld [vmem:[#allocation5 + $0xa4] sm:$0xf]
        %v549 = vld [vmem:[#allocation5 + $0xa8] sm:$0xff]
        %v550 = vld [vmem:[#allocation5 + $0xb0] sm:$0xf]
        %v551 = vld [vmem:[#allocation5 + $0xb4] sm:$0xff]
        %v552 = vld [vmem:[#allocation5 + $0xbc] sm:$0xf]
        %v553 = vld [vmem:[%s2] sm:$0x7]
        %v555 = vlaneseq
        %v556 = vshrl.u32 %v555, 7
        %v557 = vsub.s32 0, %v556
        %v558 = vrot.slane %v553, %v557
        %v559 = vlaneseq
        %v560 = vshrl.u32 %v559, 7
        %v561 = vsub.s32 1, %v560
        %v562 = vrot.slane %v553, %v561
        %v563 = vlaneseq
        %v564 = vshrl.u32 %v563, 7
        %v565 = vsub.s32 2, %v564
        %v566 = vrot.slane %v553, %v565
        %v602 = vunpack.c.l.b16 %v521
        %v603 = vunpack.c.h.b16 %v521
        %v604 = vunpack.c.l.b16 %v522
        %v605 = vunpack.c.l.b16 %v523
        %v606 = vunpack.c.h.b16 %v523
        %v607 = vunpack.c.l.b16 %v524
        %v608 = vunpack.c.l.b16 %v525
        %v609 = vunpack.c.h.b16 %v525
        %v610 = vunpack.c.l.b16 %v526
        %v611 = vunpack.c.l.b16 %v527
        %v612 = vunpack.c.h.b16 %v527
        %v613 = vunpack.c.l.b16 %v528
        %v614 = vunpack.c.l.b16 %v529
        %v615 = vunpack.c.h.b16 %v529
        %v616 = vunpack.c.l.b16 %v530
        %v617 = vunpack.c.l.b16 %v531
        %v618 = vunpack.c.h.b16 %v531
        %v619 = vunpack.c.l.b16 %v532
        %v620 = vunpack.c.l.b16 %v533
        %v621 = vunpack.c.h.b16 %v533
        %v622 = vunpack.c.l.b16 %v534
        %v623 = vunpack.c.l.b16 %v535
        %v624 = vunpack.c.h.b16 %v535
        %v625 = vunpack.c.l.b16 %v536
        %v626 = vunpack.c.l.b16 %v537
        %v627 = vunpack.c.h.b16 %v537
        %v628 = vunpack.c.l.b16 %v538
        %v629 = vunpack.c.l.b16 %v539
        %v630 = vunpack.c.h.b16 %v539
        %v631 = vunpack.c.l.b16 %v540
        %v632 = vunpack.c.l.b16 %v541
        %v633 = vunpack.c.h.b16 %v541
        %v634 = vunpack.c.l.b16 %v542
        %v635 = vunpack.c.l.b16 %v543
        %v636 = vunpack.c.h.b16 %v543
        %v637 = vunpack.c.l.b16 %v544
        %v638 = vunpack.c.l.b16 %v545
        %v639 = vunpack.c.h.b16 %v545
        %v640 = vunpack.c.l.b16 %v546
        %v641 = vunpack.c.l.b16 %v547
        %v642 = vunpack.c.h.b16 %v547
        %v643 = vunpack.c.l.b16 %v548
        %v644 = vunpack.c.l.b16 %v549
        %v645 = vunpack.c.h.b16 %v549
        %v646 = vunpack.c.l.b16 %v550
        %v647 = vunpack.c.l.b16 %v551
        %v648 = vunpack.c.h.b16 %v551
        %v649 = vunpack.c.l.b16 %v552
        %v650 = vpack.c.b16 %v605, %v602
        %v651 = vpack.c.b16 %v606, %v603
        %v652 = vpack.c.b16 %v607, %v604
        %v653 = vpack.c.b16 %v611, %v608
        %v654 = vpack.c.b16 %v612, %v609
        %v655 = vpack.c.b16 %v613, %v610
        %v656 = vpack.c.b16 %v617, %v614
        %v657 = vpack.c.b16 %v618, %v615
        %v658 = vpack.c.b16 %v619, %v616
        %v659 = vpack.c.b16 %v623, %v620
        %v660 = vpack.c.b16 %v624, %v621
        %v661 = vpack.c.b16 %v625, %v622
        %v662 = vpack.c.b16 %v629, %v626
        %v663 = vpack.c.b16 %v630, %v627
        %v664 = vpack.c.b16 %v631, %v628
        %v665 = vpack.c.b16 %v635, %v632
        %v666 = vpack.c.b16 %v636, %v633
        %v667 = vpack.c.b16 %v637, %v634
        %v668 = vpack.c.b16 %v641, %v638
        %v669 = vpack.c.b16 %v642, %v639
        %v670 = vpack.c.b16 %v643, %v640
        %v671 = vpack.c.b16 %v647, %v644
        %v672 = vpack.c.b16 %v648, %v645
        %v673 = vpack.c.b16 %v649, %v646
        %698 = vmatprep.subr.bf16.mxu0 %v672
        %699 = vmatpush1.bf16.msra.mxu0 %v671
        %700 = vmatprep.subr.bf16.mxu0 %v669
        %701 = vmatpush1.bf16.msra.mxu0 %v668
        %702 = vmatprep.subr.bf16.mxu0 %v666
        %703 = vmatpush1.bf16.msra.mxu0 %v665
        %704 = vmatprep.subr.bf16.mxu0 %v663
        %705 = vmatpush1.bf16.msra.mxu0 %v662
        %706 = vmatprep.subr.bf16.mxu0 %v660
        %707 = vmatpush1.bf16.msra.mxu0 %v659
        %708 = vmatprep.subr.bf16.mxu0 %v657
        %709 = vmatpush1.bf16.msra.mxu0 %v656
        %710 = vmatprep.subr.bf16.mxu0 %v654
        %711 = vmatpush1.bf16.msra.mxu0 %v653
        %712 = vmatprep.subr.bf16.mxu0 %v651
        %713 = vmatpush1.bf16.msra.mxu0 %v650
        %714 = vmatprep.subr.bf16.mxu0 0
        %715 = vmatpush2.bf16.msra.mxu0 0
        %716 = vmatprep.subr.bf16.mxu0 0
        %717 = vmatpush2.bf16.msra.mxu0 0
        %718 = vmatprep.subr.bf16.mxu0 0
        %719 = vmatpush2.bf16.msra.mxu0 0
        %720 = vmatprep.subr.bf16.mxu0 0
        %721 = vmatpush2.bf16.msra.mxu0 0
        %722 = vmatprep.subr.bf16.mxu0 0
        %723 = vmatpush2.bf16.msra.mxu0 0
        %724 = vmatprep.subr.bf16.mxu0 0
        %725 = vmatpush2.bf16.msra.mxu0 0
        %726 = vmatprep.subr.bf16.mxu0 0
        %727 = vmatpush2.bf16.msra.mxu0 0
        %728 = vmatprep.subr.bf16.mxu0 0
        %729 = vmatpush2.bf16.msra.mxu0 0
        %730 = vmatprep.mubr.bf16.mxu0 0
        %731 = vmatmul.mubr.bf16.gmra.mxu0 %v520
        %v732 = vpop.f32.mrf.mxu0
        %v733 = vadd.f32 %v558, %v732
        %v734 = vpop.f32.mrf.mxu0
        %v735 = vadd.f32 %v562, %v734
        %v736 = vpop.f32.mrf.mxu0
        %v737 = vadd.f32 %v558, %v736
        %v738 = vpop.f32.mrf.mxu0
        %v739 = vadd.f32 %v562, %v738
        %740 = vdwg.mxu0
        %741 = vmatprep.subr.bf16.mxu0 0
        %742 = vmatpush1.bf16.msra.mxu0 %v673
        %743 = vmatprep.subr.bf16.mxu0 0
        %744 = vmatpush1.bf16.msra.mxu0 %v670
        %745 = vmatprep.subr.bf16.mxu0 0
        %746 = vmatpush1.bf16.msra.mxu0 %v667
        %747 = vmatprep.subr.bf16.mxu0 0
        %748 = vmatpush1.bf16.msra.mxu0 %v664
        %749 = vmatprep.subr.bf16.mxu0 0
        %750 = vmatpush1.bf16.msra.mxu0 %v661
        %751 = vmatprep.subr.bf16.mxu0 0
        %752 = vmatpush1.bf16.msra.mxu0 %v658
        %753 = vmatprep.subr.bf16.mxu0 0
        %754 = vmatpush1.bf16.msra.mxu0 %v655
        %755 = vmatprep.subr.bf16.mxu0 0
        %756 = vmatpush1.bf16.msra.mxu0 %v652
        %757 = vmatprep.subr.bf16.mxu0 0
        %758 = vmatpush2.bf16.msra.mxu0 0
        %759 = vmatprep.subr.bf16.mxu0 0
        %760 = vmatpush2.bf16.msra.mxu0 0
        %761 = vmatprep.subr.bf16.mxu0 0
        %762 = vmatpush2.bf16.msra.mxu0 0
        %763 = vmatprep.subr.bf16.mxu0 0
        %764 = vmatpush2.bf16.msra.mxu0 0
        %765 = vmatprep.subr.bf16.mxu0 0
        %766 = vmatpush2.bf16.msra.mxu0 0
        %767 = vmatprep.subr.bf16.mxu0 0
        %768 = vmatpush2.bf16.msra.mxu0 0
        %769 = vmatprep.subr.bf16.mxu0 0
        %770 = vmatpush2.bf16.msra.mxu0 0
        %771 = vmatprep.subr.bf16.mxu0 0
        %772 = vmatpush2.bf16.msra.mxu0 0
        %773 = vmatprep.mubr.bf16.mxu0 0
        %774 = vmatmul.mubr.bf16.gmra.mxu0 %v520
        %v775 = vpop.f32.mrf.mxu0
        %v776 = vadd.f32 %v566, %v775
        %v777 = vpop.f32.mrf.mxu0
        %v778 = vpop.f32.mrf.mxu0
        %v779 = vadd.f32 %v566, %v778
        %v780 = vpop.f32.mrf.mxu0
        %781 = vdwg.mxu0
        %v782 = vpack.c.bf16 %v737, %v733
        %v783 = vpack.c.bf16 %v739, %v735
        %v784 = vpack.c.bf16 %v779, %v776
        %786 = vrot.lane.b32.xlu0 %v782, 112
        %v787 = vpop.permute.xlu0 %786
        %788 = vrot.lane.b32.xlu0 %v782, 96
        %v789 = vpop.permute.xlu0 %788
        %790 = vrot.lane.b32.xlu0 %v782, 80
        %v791 = vpop.permute.xlu0 %790
        %792 = vrot.lane.b32.xlu0 %v782, 64
        %v793 = vpop.permute.xlu0 %792
        %794 = vrot.lane.b32.xlu0 %v782, 48
        %v795 = vpop.permute.xlu0 %794
        %796 = vrot.lane.b32.xlu0 %v782, 32
        %v797 = vpop.permute.xlu0 %796
        %798 = vrot.lane.b32.xlu0 %v782, 16
        %v799 = vpop.permute.xlu0 %798
        %801 = vrot.lane.b32.xlu0 %v783, 112
        %v802 = vpop.permute.xlu0 %801
        %803 = vrot.lane.b32.xlu0 %v783, 96
        %v804 = vpop.permute.xlu0 %803
        %805 = vrot.lane.b32.xlu0 %v783, 80
        %v806 = vpop.permute.xlu0 %805
        %807 = vrot.lane.b32.xlu0 %v783, 64
        %v808 = vpop.permute.xlu0 %807
        %809 = vrot.lane.b32.xlu0 %v783, 48
        %v810 = vpop.permute.xlu0 %809
        %811 = vrot.lane.b32.xlu0 %v783, 32
        %v812 = vpop.permute.xlu0 %811
        %813 = vrot.lane.b32.xlu0 %v783, 16
        %v814 = vpop.permute.xlu0 %813
        %816 = vrot.lane.b32.xlu0 %v784, 112
        %v817 = vpop.permute.xlu0 %816
        %819 = vrot.lane.b32.xlu0 %v784, 96
        %v820 = vpop.permute.xlu0 %819
        %822 = vrot.lane.b32.xlu0 %v784, 80
        %v823 = vpop.permute.xlu0 %822
        %825 = vrot.lane.b32.xlu0 %v784, 64
        %v826 = vpop.permute.xlu0 %825
        %828 = vrot.lane.b32.xlu0 %v784, 48
        %v829 = vpop.permute.xlu0 %828
        %831 = vrot.lane.b32.xlu0 %v784, 32
        %v832 = vpop.permute.xlu0 %831
        %834 = vrot.lane.b32.xlu0 %v784, 16
        %v835 = vpop.permute.xlu0 %834
        %vm837 = vcmask 130048
        %v839 = vsel %vm837, %v782, 0
        %v842 = vsel %vm837, %v783, 0
        %844 = vmatprep.subr.bf16.mxu0 0
        %845 = vmatpush1.bf16.xpose.msra.mxu0 0
        %846 = vmatprep.subr.bf16.mxu0 0
        %847 = vmatpush1.bf16.xpose.msra.mxu0 0
        %848 = vmatprep.subr.bf16.mxu0 0
        %849 = vmatpush1.bf16.xpose.msra.mxu0 0
        %850 = vmatprep.subr.bf16.mxu0 0
        %851 = vmatpush1.bf16.xpose.msra.mxu0 0
        %852 = vmatprep.subr.bf16.mxu0 0
        %853 = vmatpush1.bf16.xpose.msra.mxu0 0
        %854 = vmatprep.subr.bf16.mxu0 0
        %855 = vmatpush1.bf16.xpose.msra.mxu0 0
        %856 = vmatprep.subr.bf16.mxu0 0
        %857 = vmatpush1.bf16.xpose.msra.mxu0 0
        %858 = vmatprep.subr.bf16.mxu0 0
        %859 = vmatpush1.bf16.xpose.msra.mxu0 %v842
        %860 = vmatprep.subr.bf16.mxu0 0
        %861 = vmatpush2.bf16.xpose.msra.mxu0 0
        %862 = vmatprep.subr.bf16.mxu0 0
        %863 = vmatpush2.bf16.xpose.msra.mxu0 0
        %864 = vmatprep.subr.bf16.mxu0 0
        %865 = vmatpush2.bf16.xpose.msra.mxu0 0
        %866 = vmatprep.subr.bf16.mxu0 0
        %867 = vmatpush2.bf16.xpose.msra.mxu0 0
        %868 = vmatprep.subr.bf16.mxu0 0
        %869 = vmatpush2.bf16.xpose.msra.mxu0 0
        %870 = vmatprep.subr.bf16.mxu0 0
        %871 = vmatpush2.bf16.xpose.msra.mxu0 0
        %872 = vmatprep.subr.bf16.mxu0 0
        %873 = vmatpush2.bf16.xpose.msra.mxu0 0
        %874 = vmatprep.subr.bf16.mxu0 0
        %875 = vmatpush2.bf16.xpose.msra.mxu0 0
        %876 = vmatprep.mubr.bf16.mxu0 0
        %877 = vmatmul.mubr.bf16.gmra.mxu0 %v839
        %v878 = vpop.f32.mrf.mxu0
        %v879 = vadd.f32 0.0, %v878
        %v880 = vpop.f32.mrf.mxu0
        %v881 = vpop.f32.mrf.mxu0
        %v882 = vadd.f32 0.0, %v881
        %v883 = vpop.f32.mrf.mxu0
        %884 = vdwg.mxu0
        %v886 = vsel %vm837, %v787, 0
        %v889 = vsel %vm837, %v802, 0
        %891 = vmatprep.subr.bf16.mxu0 0
        %892 = vmatpush1.bf16.xpose.msra.mxu0 0
        %893 = vmatprep.subr.bf16.mxu0 0
        %894 = vmatpush1.bf16.xpose.msra.mxu0 0
        %895 = vmatprep.subr.bf16.mxu0 0
        %896 = vmatpush1.bf16.xpose.msra.mxu0 0
        %897 = vmatprep.subr.bf16.mxu0 0
        %898 = vmatpush1.bf16.xpose.msra.mxu0 0
        %899 = vmatprep.subr.bf16.mxu0 0
        %900 = vmatpush1.bf16.xpose.msra.mxu0 0
        %901 = vmatprep.subr.bf16.mxu0 0
        %902 = vmatpush1.bf16.xpose.msra.mxu0 0
        %903 = vmatprep.subr.bf16.mxu0 0
        %904 = vmatpush1.bf16.xpose.msra.mxu0 0
        %905 = vmatprep.subr.bf16.mxu0 0
        %906 = vmatpush1.bf16.xpose.msra.mxu0 %v889
        %907 = vmatprep.subr.bf16.mxu0 0
        %908 = vmatpush2.bf16.xpose.msra.mxu0 0
        %909 = vmatprep.subr.bf16.mxu0 0
        %910 = vmatpush2.bf16.xpose.msra.mxu0 0
        %911 = vmatprep.subr.bf16.mxu0 0
        %912 = vmatpush2.bf16.xpose.msra.mxu0 0
        %913 = vmatprep.subr.bf16.mxu0 0
        %914 = vmatpush2.bf16.xpose.msra.mxu0 0
        %915 = vmatprep.subr.bf16.mxu0 0
        %916 = vmatpush2.bf16.xpose.msra.mxu0 0
        %917 = vmatprep.subr.bf16.mxu0 0
        %918 = vmatpush2.bf16.xpose.msra.mxu0 0
        %919 = vmatprep.subr.bf16.mxu0 0
        %920 = vmatpush2.bf16.xpose.msra.mxu0 0
        %921 = vmatprep.subr.bf16.mxu0 0
        %922 = vmatpush2.bf16.xpose.msra.mxu0 0
        %923 = vmatprep.mubr.bf16.mxu0 0
        %924 = vmatmul.mubr.bf16.gmra.mxu0 %v886
        %v925 = vpop.f32.mrf.mxu0
        %v926 = vadd.f32 0.0, %v925
        %v927 = vpop.f32.mrf.mxu0
        %v928 = vpop.f32.mrf.mxu0
        %v929 = vadd.f32 0.0, %v928
        %v930 = vpop.f32.mrf.mxu0
        %931 = vdwg.mxu0
        %v933 = vsel %vm837, %v789, 0
        %v936 = vsel %vm837, %v804, 0
        %938 = vmatprep.subr.bf16.mxu0 0
        %939 = vmatpush1.bf16.xpose.msra.mxu0 0
        %940 = vmatprep.subr.bf16.mxu0 0
        %941 = vmatpush1.bf16.xpose.msra.mxu0 0
        %942 = vmatprep.subr.bf16.mxu0 0
        %943 = vmatpush1.bf16.xpose.msra.mxu0 0
        %944 = vmatprep.subr.bf16.mxu0 0
        %945 = vmatpush1.bf16.xpose.msra.mxu0 0
        %946 = vmatprep.subr.bf16.mxu0 0
        %947 = vmatpush1.bf16.xpose.msra.mxu0 0
        %948 = vmatprep.subr.bf16.mxu0 0
        %949 = vmatpush1.bf16.xpose.msra.mxu0 0
        %950 = vmatprep.subr.bf16.mxu0 0
        %951 = vmatpush1.bf16.xpose.msra.mxu0 0
        %952 = vmatprep.subr.bf16.mxu0 0
        %953 = vmatpush1.bf16.xpose.msra.mxu0 %v936
        %954 = vmatprep.subr.bf16.mxu0 0
        %955 = vmatpush2.bf16.xpose.msra.mxu0 0
        %956 = vmatprep.subr.bf16.mxu0 0
        %957 = vmatpush2.bf16.xpose.msra.mxu0 0
        %958 = vmatprep.subr.bf16.mxu0 0
        %959 = vmatpush2.bf16.xpose.msra.mxu0 0
        %960 = vmatprep.subr.bf16.mxu0 0
        %961 = vmatpush2.bf16.xpose.msra.mxu0 0
        %962 = vmatprep.subr.bf16.mxu0 0
        %963 = vmatpush2.bf16.xpose.msra.mxu0 0
        %964 = vmatprep.subr.bf16.mxu0 0
        %965 = vmatpush2.bf16.xpose.msra.mxu0 0
        %966 = vmatprep.subr.bf16.mxu0 0
        %967 = vmatpush2.bf16.xpose.msra.mxu0 0
        %968 = vmatprep.subr.bf16.mxu0 0
        %969 = vmatpush2.bf16.xpose.msra.mxu0 0
        %970 = vmatprep.mubr.bf16.mxu0 0
        %971 = vmatmul.mubr.bf16.gmra.mxu0 %v933
        %v972 = vpop.f32.mrf.mxu0
        %v973 = vadd.f32 0.0, %v972
        %v974 = vpop.f32.mrf.mxu0
        %v975 = vpop.f32.mrf.mxu0
        %v976 = vadd.f32 0.0, %v975
        %v977 = vpop.f32.mrf.mxu0
        %978 = vdwg.mxu0
        %v980 = vsel %vm837, %v791, 0
        %v983 = vsel %vm837, %v806, 0
        %985 = vmatprep.subr.bf16.mxu0 0
        %986 = vmatpush1.bf16.xpose.msra.mxu0 0
        %987 = vmatprep.subr.bf16.mxu0 0
        %988 = vmatpush1.bf16.xpose.msra.mxu0 0
        %989 = vmatprep.subr.bf16.mxu0 0
        %990 = vmatpush1.bf16.xpose.msra.mxu0 0
        %991 = vmatprep.subr.bf16.mxu0 0
        %992 = vmatpush1.bf16.xpose.msra.mxu0 0
        %993 = vmatprep.subr.bf16.mxu0 0
        %994 = vmatpush1.bf16.xpose.msra.mxu0 0
        %995 = vmatprep.subr.bf16.mxu0 0
        %996 = vmatpush1.bf16.xpose.msra.mxu0 0
        %997 = vmatprep.subr.bf16.mxu0 0
        %998 = vmatpush1.bf16.xpose.msra.mxu0 0
        %999 = vmatprep.subr.bf16.mxu0 0
        %1000 = vmatpush1.bf16.xpose.msra.mxu0 %v983
        %1001 = vmatprep.subr.bf16.mxu0 0
        %1002 = vmatpush2.bf16.xpose.msra.mxu0 0
        %1003 = vmatprep.subr.bf16.mxu0 0
        %1004 = vmatpush2.bf16.xpose.msra.mxu0 0
        %1005 = vmatprep.subr.bf16.mxu0 0
        %1006 = vmatpush2.bf16.xpose.msra.mxu0 0
        %1007 = vmatprep.subr.bf16.mxu0 0
        %1008 = vmatpush2.bf16.xpose.msra.mxu0 0
        %1009 = vmatprep.subr.bf16.mxu0 0
        %1010 = vmatpush2.bf16.xpose.msra.mxu0 0
        %1011 = vmatprep.subr.bf16.mxu0 0
        %1012 = vmatpush2.bf16.xpose.msra.mxu0 0
        %1013 = vmatprep.subr.bf16.mxu0 0
        %1014 = vmatpush2.bf16.xpose.msra.mxu0 0
        %1015 = vmatprep.subr.bf16.mxu0 0
        %1016 = vmatpush2.bf16.xpose.msra.mxu0 0
        %1017 = vmatprep.mubr.bf16.mxu0 0
        %1018 = vmatmul.mubr.bf16.gmra.mxu0 %v980
        %v1019 = vpop.f32.mrf.mxu0
        %v1020 = vadd.f32 0.0, %v1019
        %v1021 = vpop.f32.mrf.mxu0
        %v1022 = vpop.f32.mrf.mxu0
        %v1023 = vadd.f32 0.0, %v1022
        %v1024 = vpop.f32.mrf.mxu0
        %1025 = vdwg.mxu0
        %v1027 = vsel %vm837, %v793, 0
        %v1030 = vsel %vm837, %v808, 0
        %1032 = vmatprep.subr.bf16.mxu0 0
        %1033 = vmatpush1.bf16.xpose.msra.mxu0 0
        %1034 = vmatprep.subr.bf16.mxu0 0
        %1035 = vmatpush1.bf16.xpose.msra.mxu0 0
        %1036 = vmatprep.subr.bf16.mxu0 0
        %1037 = vmatpush1.bf16.xpose.msra.mxu0 0
        %1038 = vmatprep.subr.bf16.mxu0 0
        %1039 = vmatpush1.bf16.xpose.msra.mxu0 0
        %1040 = vmatprep.subr.bf16.mxu0 0
        %1041 = vmatpush1.bf16.xpose.msra.mxu0 0
        %1042 = vmatprep.subr.bf16.mxu0 0
        %1043 = vmatpush1.bf16.xpose.msra.mxu0 0
        %1044 = vmatprep.subr.bf16.mxu0 0
        %1045 = vmatpush1.bf16.xpose.msra.mxu0 0
        %1046 = vmatprep.subr.bf16.mxu0 0
        %1047 = vmatpush1.bf16.xpose.msra.mxu0 %v1030
        %1048 = vmatprep.subr.bf16.mxu0 0
        %1049 = vmatpush2.bf16.xpose.msra.mxu0 0
        %1050 = vmatprep.subr.bf16.mxu0 0
        %1051 = vmatpush2.bf16.xpose.msra.mxu0 0
        %1052 = vmatprep.subr.bf16.mxu0 0
        %1053 = vmatpush2.bf16.xpose.msra.mxu0 0
        %1054 = vmatprep.subr.bf16.mxu0 0
        %1055 = vmatpush2.bf16.xpose.msra.mxu0 0
        %1056 = vmatprep.subr.bf16.mxu0 0
        %1057 = vmatpush2.bf16.xpose.msra.mxu0 0
        %1058 = vmatprep.subr.bf16.mxu0 0
        %1059 = vmatpush2.bf16.xpose.msra.mxu0 0
        %1060 = vmatprep.subr.bf16.mxu0 0
        %1061 = vmatpush2.bf16.xpose.msra.mxu0 0
        %1062 = vmatprep.subr.bf16.mxu0 0
        %1063 = vmatpush2.bf16.xpose.msra.mxu0 0
        %1064 = vmatprep.mubr.bf16.mxu0 0
        %1065 = vmatmul.mubr.bf16.gmra.mxu0 %v1027
        %v1066 = vpop.f32.mrf.mxu0
        %v1067 = vadd.f32 0.0, %v1066
        %v1068 = vpop.f32.mrf.mxu0
        %v1069 = vpop.f32.mrf.mxu0
        %v1070 = vadd.f32 0.0, %v1069
        %v1071 = vpop.f32.mrf.mxu0
        %1072 = vdwg.mxu0
        %v1074 = vsel %vm837, %v795, 0
        %v1077 = vsel %vm837, %v810, 0
        %1079 = vmatprep.subr.bf16.mxu0 0
        %1080 = vmatpush1.bf16.xpose.msra.mxu0 0
        %1081 = vmatprep.subr.bf16.mxu0 0
        %1082 = vmatpush1.bf16.xpose.msra.mxu0 0
        %1083 = vmatprep.subr.bf16.mxu0 0
        %1084 = vmatpush1.bf16.xpose.msra.mxu0 0
        %1085 = vmatprep.subr.bf16.mxu0 0
        %1086 = vmatpush1.bf16.xpose.msra.mxu0 0
        %1087 = vmatprep.subr.bf16.mxu0 0
        %1088 = vmatpush1.bf16.xpose.msra.mxu0 0
        %1089 = vmatprep.subr.bf16.mxu0 0
        %1090 = vmatpush1.bf16.xpose.msra.mxu0 0
        %1091 = vmatprep.subr.bf16.mxu0 0
        %1092 = vmatpush1.bf16.xpose.msra.mxu0 0
        %1093 = vmatprep.subr.bf16.mxu0 0
        %1094 = vmatpush1.bf16.xpose.msra.mxu0 %v1077
        %1095 = vmatprep.subr.bf16.mxu0 0
        %1096 = vmatpush2.bf16.xpose.msra.mxu0 0
        %1097 = vmatprep.subr.bf16.mxu0 0
        %1098 = vmatpush2.bf16.xpose.msra.mxu0 0
        %1099 = vmatprep.subr.bf16.mxu0 0
        %1100 = vmatpush2.bf16.xpose.msra.mxu0 0
        %1101 = vmatprep.subr.bf16.mxu0 0
        %1102 = vmatpush2.bf16.xpose.msra.mxu0 0
        %1103 = vmatprep.subr.bf16.mxu0 0
        %1104 = vmatpush2.bf16.xpose.msra.mxu0 0
        %1105 = vmatprep.subr.bf16.mxu0 0
        %1106 = vmatpush2.bf16.xpose.msra.mxu0 0
        %1107 = vmatprep.subr.bf16.mxu0 0
        %1108 = vmatpush2.bf16.xpose.msra.mxu0 0
        %1109 = vmatprep.subr.bf16.mxu0 0
        %1110 = vmatpush2.bf16.xpose.msra.mxu0 0
        %1111 = vmatprep.mubr.bf16.mxu0 0
        %1112 = vmatmul.mubr.bf16.gmra.mxu0 %v1074
        %v1113 = vpop.f32.mrf.mxu0
        %v1114 = vadd.f32 0.0, %v1113
        %v1115 = vpop.f32.mrf.mxu0
        %v1116 = vpop.f32.mrf.mxu0
        %v1117 = vadd.f32 0.0, %v1116
        %v1118 = vpop.f32.mrf.mxu0
        %1119 = vdwg.mxu0
        %v1121 = vsel %vm837, %v797, 0
        %v1124 = vsel %vm837, %v812, 0
        %1126 = vmatprep.subr.bf16.mxu0 0
        %1127 = vmatpush1.bf16.xpose.msra.mxu0 0
        %1128 = vmatprep.subr.bf16.mxu0 0
        %1129 = vmatpush1.bf16.xpose.msra.mxu0 0
        %1130 = vmatprep.subr.bf16.mxu0 0
        %1131 = vmatpush1.bf16.xpose.msra.mxu0 0
        %1132 = vmatprep.subr.bf16.mxu0 0
        %1133 = vmatpush1.bf16.xpose.msra.mxu0 0
        %1134 = vmatprep.subr.bf16.mxu0 0
        %1135 = vmatpush1.bf16.xpose.msra.mxu0 0
        %1136 = vmatprep.subr.bf16.mxu0 0
        %1137 = vmatpush1.bf16.xpose.msra.mxu0 0
        %1138 = vmatprep.subr.bf16.mxu0 0
        %1139 = vmatpush1.bf16.xpose.msra.mxu0 0
        %1140 = vmatprep.subr.bf16.mxu0 0
        %1141 = vmatpush1.bf16.xpose.msra.mxu0 %v1124
        %1142 = vmatprep.subr.bf16.mxu0 0
        %1143 = vmatpush2.bf16.xpose.msra.mxu0 0
        %1144 = vmatprep.subr.bf16.mxu0 0
        %1145 = vmatpush2.bf16.xpose.msra.mxu0 0
        %1146 = vmatprep.subr.bf16.mxu0 0
        %1147 = vmatpush2.bf16.xpose.msra.mxu0 0
        %1148 = vmatprep.subr.bf16.mxu0 0
        %1149 = vmatpush2.bf16.xpose.msra.mxu0 0
        %1150 = vmatprep.subr.bf16.mxu0 0
        %1151 = vmatpush2.bf16.xpose.msra.mxu0 0
        %1152 = vmatprep.subr.bf16.mxu0 0
        %1153 = vmatpush2.bf16.xpose.msra.mxu0 0
        %1154 = vmatprep.subr.bf16.mxu0 0
        %1155 = vmatpush2.bf16.xpose.msra.mxu0 0
        %1156 = vmatprep.subr.bf16.mxu0 0
        %1157 = vmatpush2.bf16.xpose.msra.mxu0 0
        %1158 = vmatprep.mubr.bf16.mxu0 0
        %1159 = vmatmul.mubr.bf16.gmra.mxu0 %v1121
        %v1160 = vpop.f32.mrf.mxu0
        %v1161 = vadd.f32 0.0, %v1160
        %v1162 = vpop.f32.mrf.mxu0
        %v1163 = vpop.f32.mrf.mxu0
        %v1164 = vadd.f32 0.0, %v1163
        %v1165 = vpop.f32.mrf.mxu0
        %1166 = vdwg.mxu0
        %v1168 = vsel %vm837, %v799, 0
        %v1171 = vsel %vm837, %v814, 0
        %1173 = vmatprep.subr.bf16.mxu0 0
        %1174 = vmatpush1.bf16.xpose.msra.mxu0 0
        %1175 = vmatprep.subr.bf16.mxu0 0
        %1176 = vmatpush1.bf16.xpose.msra.mxu0 0
        %1177 = vmatprep.subr.bf16.mxu0 0
        %1178 = vmatpush1.bf16.xpose.msra.mxu0 0
        %1179 = vmatprep.subr.bf16.mxu0 0
        %1180 = vmatpush1.bf16.xpose.msra.mxu0 0
        %1181 = vmatprep.subr.bf16.mxu0 0
        %1182 = vmatpush1.bf16.xpose.msra.mxu0 0
        %1183 = vmatprep.subr.bf16.mxu0 0
        %1184 = vmatpush1.bf16.xpose.msra.mxu0 0
        %1185 = vmatprep.subr.bf16.mxu0 0
        %1186 = vmatpush1.bf16.xpose.msra.mxu0 0
        %1187 = vmatprep.subr.bf16.mxu0 0
        %1188 = vmatpush1.bf16.xpose.msra.mxu0 %v1171
        %1189 = vmatprep.subr.bf16.mxu0 0
        %1190 = vmatpush2.bf16.xpose.msra.mxu0 0
        %1191 = vmatprep.subr.bf16.mxu0 0
        %1192 = vmatpush2.bf16.xpose.msra.mxu0 0
        %1193 = vmatprep.subr.bf16.mxu0 0
        %1194 = vmatpush2.bf16.xpose.msra.mxu0 0
        %1195 = vmatprep.subr.bf16.mxu0 0
        %1196 = vmatpush2.bf16.xpose.msra.mxu0 0
        %1197 = vmatprep.subr.bf16.mxu0 0
        %1198 = vmatpush2.bf16.xpose.msra.mxu0 0
        %1199 = vmatprep.subr.bf16.mxu0 0
        %1200 = vmatpush2.bf16.xpose.msra.mxu0 0
        %1201 = vmatprep.subr.bf16.mxu0 0
        %1202 = vmatpush2.bf16.xpose.msra.mxu0 0
        %1203 = vmatprep.subr.bf16.mxu0 0
        %1204 = vmatpush2.bf16.xpose.msra.mxu0 0
        %1205 = vmatprep.mubr.bf16.mxu0 0
        %1206 = vmatmul.mubr.bf16.gmra.mxu0 %v1168
        %v1207 = vpop.f32.mrf.mxu0
        %v1208 = vadd.f32 0.0, %v1207
        %v1209 = vpop.f32.mrf.mxu0
        %v1210 = vpop.f32.mrf.mxu0
        %v1211 = vadd.f32 0.0, %v1210
        %v1212 = vpop.f32.mrf.mxu0
        %1213 = vdwg.mxu0
        %v1214 = vsel %vm837, %v879, -inf
        %1215 = vmax.xlane.f32.xlu0 %v1214
        %v1216 = vpop.xlane.xlu0 %1215
        %v1217 = vsel %vm837, %v882, -inf
        %1218 = vmax.xlane.f32.xlu0 %v1217
        %v1219 = vpop.xlane.xlu0 %1218
        %v1220 = vsel %vm837, %v926, -inf
        %1221 = vmax.xlane.f32.xlu0 %v1220
        %v1222 = vpop.xlane.xlu0 %1221
        %v1223 = vsel %vm837, %v929, -inf
        %1224 = vmax.xlane.f32.xlu0 %v1223
        %v1225 = vpop.xlane.xlu0 %1224
        %v1226 = vsel %vm837, %v973, -inf
        %1227 = vmax.xlane.f32.xlu0 %v1226
        %v1228 = vpop.xlane.xlu0 %1227
        %v1229 = vsel %vm837, %v976, -inf
        %1230 = vmax.xlane.f32.xlu0 %v1229
        %v1231 = vpop.xlane.xlu0 %1230
        %v1232 = vsel %vm837, %v1020, -inf
        %1233 = vmax.xlane.f32.xlu0 %v1232
        %v1234 = vpop.xlane.xlu0 %1233
        %v1235 = vsel %vm837, %v1023, -inf
        %1236 = vmax.xlane.f32.xlu0 %v1235
        %v1237 = vpop.xlane.xlu0 %1236
        %v1238 = vsel %vm837, %v1067, -inf
        %1239 = vmax.xlane.f32.xlu0 %v1238
        %v1240 = vpop.xlane.xlu0 %1239
        %v1241 = vsel %vm837, %v1070, -inf
        %1242 = vmax.xlane.f32.xlu0 %v1241
        %v1243 = vpop.xlane.xlu0 %1242
        %v1244 = vsel %vm837, %v1114, -inf
        %1245 = vmax.xlane.f32.xlu0 %v1244
        %v1246 = vpop.xlane.xlu0 %1245
        %v1247 = vsel %vm837, %v1117, -inf
        %1248 = vmax.xlane.f32.xlu0 %v1247
        %v1249 = vpop.xlane.xlu0 %1248
        %v1250 = vsel %vm837, %v1161, -inf
        %1251 = vmax.xlane.f32.xlu0 %v1250
        %v1252 = vpop.xlane.xlu0 %1251
        %v1253 = vsel %vm837, %v1164, -inf
        %1254 = vmax.xlane.f32.xlu0 %v1253
        %v1255 = vpop.xlane.xlu0 %1254
        %v1256 = vsel %vm837, %v1208, -inf
        %1257 = vmax.xlane.f32.xlu0 %v1256
        %v1258 = vpop.xlane.xlu0 %1257
        %v1259 = vsel %vm837, %v1211, -inf
        %1260 = vmax.xlane.f32.xlu0 %v1259
        %v1261 = vpop.xlane.xlu0 %1260
        %v1262 = vsub.f32 %v879, %v1216
        %v1263 = vsub.f32 %v882, %v1219
        %v1264 = vsub.f32 %v926, %v1222
        %v1265 = vsub.f32 %v929, %v1225
        %v1266 = vsub.f32 %v973, %v1228
        %v1267 = vsub.f32 %v976, %v1231
        %v1268 = vsub.f32 %v1020, %v1234
        %v1269 = vsub.f32 %v1023, %v1237
        %v1270 = vsub.f32 %v1067, %v1240
        %v1271 = vsub.f32 %v1070, %v1243
        %v1272 = vsub.f32 %v1114, %v1246
        %v1273 = vsub.f32 %v1117, %v1249
        %v1274 = vsub.f32 %v1161, %v1252
        %v1275 = vsub.f32 %v1164, %v1255
        %v1276 = vsub.f32 %v1208, %v1258
        %v1277 = vsub.f32 %v1211, %v1261
        %v1278 = vmul.f32 %v1262, 1.442695
        %v1279 = vpow.pop %v1278
        %v1280 = vmul.f32 %v1263, 1.442695
        %v1281 = vpow.pop %v1280
        %v1282 = vmul.f32 %v1264, 1.442695
        %v1283 = vpow.pop %v1282
        %v1284 = vmul.f32 %v1265, 1.442695
        %v1285 = vpow.pop %v1284
        %v1286 = vmul.f32 %v1266, 1.442695
        %v1287 = vpow.pop %v1286
        %v1288 = vmul.f32 %v1267, 1.442695
        %v1289 = vpow.pop %v1288
        %v1290 = vmul.f32 %v1268, 1.442695
        %v1291 = vpow.pop %v1290
        %v1292 = vmul.f32 %v1269, 1.442695
        %v1293 = vpow.pop %v1292
        %v1294 = vmul.f32 %v1270, 1.442695
        %v1295 = vpow.pop %v1294
        %v1296 = vmul.f32 %v1271, 1.442695
        %v1297 = vpow.pop %v1296
        %v1298 = vmul.f32 %v1272, 1.442695
        %v1299 = vpow.pop %v1298
        %v1300 = vmul.f32 %v1273, 1.442695
        %v1301 = vpow.pop %v1300
        %v1302 = vmul.f32 %v1274, 1.442695
        %v1303 = vpow.pop %v1302
        %v1304 = vmul.f32 %v1275, 1.442695
        %v1305 = vpow.pop %v1304
        %v1306 = vmul.f32 %v1276, 1.442695
        %v1307 = vpow.pop %v1306
        %v1308 = vmul.f32 %v1277, 1.442695
        %v1309 = vpow.pop %v1308
        %v1310 = vsel %vm837, %v1279, 0.0
        %1311 = vadd.xlane.f32.xlu0 %v1310
        %v1312 = vpop.xlane.xlu0 %1311
        %v1313 = vsel %vm837, %v1281, 0.0
        %1314 = vadd.xlane.f32.xlu0 %v1313
        %v1315 = vpop.xlane.xlu0 %1314
        %v1316 = vsel %vm837, %v1283, 0.0
        %1317 = vadd.xlane.f32.xlu0 %v1316
        %v1318 = vpop.xlane.xlu0 %1317
        %v1319 = vsel %vm837, %v1285, 0.0
        %1320 = vadd.xlane.f32.xlu0 %v1319
        %v1321 = vpop.xlane.xlu0 %1320
        %v1322 = vsel %vm837, %v1287, 0.0
        %1323 = vadd.xlane.f32.xlu0 %v1322
        %v1324 = vpop.xlane.xlu0 %1323
        %v1325 = vsel %vm837, %v1289, 0.0
        %1326 = vadd.xlane.f32.xlu0 %v1325
        %v1327 = vpop.xlane.xlu0 %1326
        %v1328 = vsel %vm837, %v1291, 0.0
        %1329 = vadd.xlane.f32.xlu0 %v1328
        %v1330 = vpop.xlane.xlu0 %1329
        %v1331 = vsel %vm837, %v1293, 0.0
        %1332 = vadd.xlane.f32.xlu0 %v1331
        %v1333 = vpop.xlane.xlu0 %1332
        %v1334 = vsel %vm837, %v1295, 0.0
        %1335 = vadd.xlane.f32.xlu0 %v1334
        %v1336 = vpop.xlane.xlu0 %1335
        %v1337 = vsel %vm837, %v1297, 0.0
        %1338 = vadd.xlane.f32.xlu0 %v1337
        %v1339 = vpop.xlane.xlu0 %1338
        %v1340 = vsel %vm837, %v1299, 0.0
        %1341 = vadd.xlane.f32.xlu0 %v1340
        %v1342 = vpop.xlane.xlu0 %1341
        %v1343 = vsel %vm837, %v1301, 0.0
        %1344 = vadd.xlane.f32.xlu0 %v1343
        %v1345 = vpop.xlane.xlu0 %1344
        %v1346 = vsel %vm837, %v1303, 0.0
        %1347 = vadd.xlane.f32.xlu0 %v1346
        %v1348 = vpop.xlane.xlu0 %1347
        %v1349 = vsel %vm837, %v1305, 0.0
        %1350 = vadd.xlane.f32.xlu0 %v1349
        %v1351 = vpop.xlane.xlu0 %1350
        %v1352 = vsel %vm837, %v1307, 0.0
        %1353 = vadd.xlane.f32.xlu0 %v1352
        %v1354 = vpop.xlane.xlu0 %1353
        %v1355 = vsel %vm837, %v1309, 0.0
        %1356 = vadd.xlane.f32.xlu0 %v1355
        %v1357 = vpop.xlane.xlu0 %1356
        %v1358 = vpack.c.bf16 %v1281, %v1279
        %v1359 = vpack.c.bf16 %v1285, %v1283
        %v1360 = vpack.c.bf16 %v1289, %v1287
        %v1361 = vpack.c.bf16 %v1293, %v1291
        %v1362 = vpack.c.bf16 %v1297, %v1295
        %v1363 = vpack.c.bf16 %v1301, %v1299
        %v1364 = vpack.c.bf16 %v1305, %v1303
        %v1365 = vpack.c.bf16 %v1309, %v1307
        %v1367 = vsel %vm837, %v1358, 0
        %1369 = vmatprep.subr.bf16.mxu0 0
        %1370 = vmatpush1.bf16.msra.mxu0 0
        %1371 = vmatprep.subr.bf16.mxu0 0
        %1372 = vmatpush1.bf16.msra.mxu0 0
        %1373 = vmatprep.subr.bf16.mxu0 0
        %1374 = vmatpush1.bf16.msra.mxu0 0
        %1375 = vmatprep.subr.bf16.mxu0 0
        %1376 = vmatpush1.bf16.msra.mxu0 0
        %1377 = vmatprep.subr.bf16.mxu0 0
        %1378 = vmatpush1.bf16.msra.mxu0 0
        %1379 = vmatprep.subr.bf16.mxu0 0
        %1380 = vmatpush1.bf16.msra.mxu0 0
        %1381 = vmatprep.subr.bf16.mxu0 0
        %1382 = vmatpush1.bf16.msra.mxu0 0
        %1383 = vmatprep.subr.bf16.mxu0 0
        %1384 = vmatpush1.bf16.msra.mxu0 %v784
        %1385 = vmatprep.subr.bf16.mxu0 0
        %1386 = vmatpush2.bf16.msra.mxu0 0
        %1387 = vmatprep.subr.bf16.mxu0 0
        %1388 = vmatpush2.bf16.msra.mxu0 0
        %1389 = vmatprep.subr.bf16.mxu0 0
        %1390 = vmatpush2.bf16.msra.mxu0 0
        %1391 = vmatprep.subr.bf16.mxu0 0
        %1392 = vmatpush2.bf16.msra.mxu0 0
        %1393 = vmatprep.subr.bf16.mxu0 0
        %1394 = vmatpush2.bf16.msra.mxu0 0
        %1395 = vmatprep.subr.bf16.mxu0 0
        %1396 = vmatpush2.bf16.msra.mxu0 0
        %1397 = vmatprep.subr.bf16.mxu0 0
        %1398 = vmatpush2.bf16.msra.mxu0 0
        %1399 = vmatprep.subr.bf16.mxu0 0
        %1400 = vmatpush2.bf16.msra.mxu0 0
        %1401 = vmatprep.mubr.bf16.mxu0 0
        %1402 = vmatmul.mubr.bf16.gmra.mxu0 %v1367
        %v1403 = vpop.f32.mrf.mxu0
        %v1404 = vadd.f32 0.0, %v1403
        %v1405 = vpop.f32.mrf.mxu0
        %v1406 = vpop.f32.mrf.mxu0
        %v1407 = vadd.f32 0.0, %v1406
        %v1408 = vpop.f32.mrf.mxu0
        %1409 = vdwg.mxu0
        %v1411 = vsel %vm837, %v1359, 0
        %1413 = vmatprep.subr.bf16.mxu0 0
        %1414 = vmatpush1.bf16.msra.mxu0 0
        %1415 = vmatprep.subr.bf16.mxu0 0
        %1416 = vmatpush1.bf16.msra.mxu0 0
        %1417 = vmatprep.subr.bf16.mxu0 0
        %1418 = vmatpush1.bf16.msra.mxu0 0
        %1419 = vmatprep.subr.bf16.mxu0 0
        %1420 = vmatpush1.bf16.msra.mxu0 0
        %1421 = vmatprep.subr.bf16.mxu0 0
        %1422 = vmatpush1.bf16.msra.mxu0 0
        %1423 = vmatprep.subr.bf16.mxu0 0
        %1424 = vmatpush1.bf16.msra.mxu0 0
        %1425 = vmatprep.subr.bf16.mxu0 0
        %1426 = vmatpush1.bf16.msra.mxu0 0
        %1427 = vmatprep.subr.bf16.mxu0 0
        %1428 = vmatpush1.bf16.msra.mxu0 %v817
        %1429 = vmatprep.subr.bf16.mxu0 0
        %1430 = vmatpush2.bf16.msra.mxu0 0
        %1431 = vmatprep.subr.bf16.mxu0 0
        %1432 = vmatpush2.bf16.msra.mxu0 0
        %1433 = vmatprep.subr.bf16.mxu0 0
        %1434 = vmatpush2.bf16.msra.mxu0 0
        %1435 = vmatprep.subr.bf16.mxu0 0
        %1436 = vmatpush2.bf16.msra.mxu0 0
        %1437 = vmatprep.subr.bf16.mxu0 0
        %1438 = vmatpush2.bf16.msra.mxu0 0
        %1439 = vmatprep.subr.bf16.mxu0 0
        %1440 = vmatpush2.bf16.msra.mxu0 0
        %1441 = vmatprep.subr.bf16.mxu0 0
        %1442 = vmatpush2.bf16.msra.mxu0 0
        %1443 = vmatprep.subr.bf16.mxu0 0
        %1444 = vmatpush2.bf16.msra.mxu0 0
        %1445 = vmatprep.mubr.bf16.mxu0 0
        %1446 = vmatmul.mubr.bf16.gmra.mxu0 %v1411
        %v1447 = vpop.f32.mrf.mxu0
        %v1448 = vadd.f32 0.0, %v1447
        %v1449 = vpop.f32.mrf.mxu0
        %v1450 = vpop.f32.mrf.mxu0
        %v1451 = vadd.f32 0.0, %v1450
        %v1452 = vpop.f32.mrf.mxu0
        %1453 = vdwg.mxu0
        %v1455 = vsel %vm837, %v1360, 0
        %1457 = vmatprep.subr.bf16.mxu0 0
        %1458 = vmatpush1.bf16.msra.mxu0 0
        %1459 = vmatprep.subr.bf16.mxu0 0
        %1460 = vmatpush1.bf16.msra.mxu0 0
        %1461 = vmatprep.subr.bf16.mxu0 0
        %1462 = vmatpush1.bf16.msra.mxu0 0
        %1463 = vmatprep.subr.bf16.mxu0 0
        %1464 = vmatpush1.bf16.msra.mxu0 0
        %1465 = vmatprep.subr.bf16.mxu0 0
        %1466 = vmatpush1.bf16.msra.mxu0 0
        %1467 = vmatprep.subr.bf16.mxu0 0
        %1468 = vmatpush1.bf16.msra.mxu0 0
        %1469 = vmatprep.subr.bf16.mxu0 0
        %1470 = vmatpush1.bf16.msra.mxu0 0
        %1471 = vmatprep.subr.bf16.mxu0 0
        %1472 = vmatpush1.bf16.msra.mxu0 %v820
        %1473 = vmatprep.subr.bf16.mxu0 0
        %1474 = vmatpush2.bf16.msra.mxu0 0
        %1475 = vmatprep.subr.bf16.mxu0 0
        %1476 = vmatpush2.bf16.msra.mxu0 0
        %1477 = vmatprep.subr.bf16.mxu0 0
        %1478 = vmatpush2.bf16.msra.mxu0 0
        %1479 = vmatprep.subr.bf16.mxu0 0
        %1480 = vmatpush2.bf16.msra.mxu0 0
        %1481 = vmatprep.subr.bf16.mxu0 0
        %1482 = vmatpush2.bf16.msra.mxu0 0
        %1483 = vmatprep.subr.bf16.mxu0 0
        %1484 = vmatpush2.bf16.msra.mxu0 0
        %1485 = vmatprep.subr.bf16.mxu0 0
        %1486 = vmatpush2.bf16.msra.mxu0 0
        %1487 = vmatprep.subr.bf16.mxu0 0
        %1488 = vmatpush2.bf16.msra.mxu0 0
        %1489 = vmatprep.mubr.bf16.mxu0 0
        %1490 = vmatmul.mubr.bf16.gmra.mxu0 %v1455
        %v1491 = vpop.f32.mrf.mxu0
        %v1492 = vadd.f32 0.0, %v1491
        %v1493 = vpop.f32.mrf.mxu0
        %v1494 = vpop.f32.mrf.mxu0
        %v1495 = vadd.f32 0.0, %v1494
        %v1496 = vpop.f32.mrf.mxu0
        %1497 = vdwg.mxu0
        %v1499 = vsel %vm837, %v1361, 0
        %1501 = vmatprep.subr.bf16.mxu0 0
        %1502 = vmatpush1.bf16.msra.mxu0 0
        %1503 = vmatprep.subr.bf16.mxu0 0
        %1504 = vmatpush1.bf16.msra.mxu0 0
        %1505 = vmatprep.subr.bf16.mxu0 0
        %1506 = vmatpush1.bf16.msra.mxu0 0
        %1507 = vmatprep.subr.bf16.mxu0 0
        %1508 = vmatpush1.bf16.msra.mxu0 0
        %1509 = vmatprep.subr.bf16.mxu0 0
        %1510 = vmatpush1.bf16.msra.mxu0 0
        %1511 = vmatprep.subr.bf16.mxu0 0
        %1512 = vmatpush1.bf16.msra.mxu0 0
        %1513 = vmatprep.subr.bf16.mxu0 0
        %1514 = vmatpush1.bf16.msra.mxu0 0
        %1515 = vmatprep.subr.bf16.mxu0 0
        %1516 = vmatpush1.bf16.msra.mxu0 %v823
        %1517 = vmatprep.subr.bf16.mxu0 0
        %1518 = vmatpush2.bf16.msra.mxu0 0
        %1519 = vmatprep.subr.bf16.mxu0 0
        %1520 = vmatpush2.bf16.msra.mxu0 0
        %1521 = vmatprep.subr.bf16.mxu0 0
        %1522 = vmatpush2.bf16.msra.mxu0 0
        %1523 = vmatprep.subr.bf16.mxu0 0
        %1524 = vmatpush2.bf16.msra.mxu0 0
        %1525 = vmatprep.subr.bf16.mxu0 0
        %1526 = vmatpush2.bf16.msra.mxu0 0
        %1527 = vmatprep.subr.bf16.mxu0 0
        %1528 = vmatpush2.bf16.msra.mxu0 0
        %1529 = vmatprep.subr.bf16.mxu0 0
        %1530 = vmatpush2.bf16.msra.mxu0 0
        %1531 = vmatprep.subr.bf16.mxu0 0
        %1532 = vmatpush2.bf16.msra.mxu0 0
        %1533 = vmatprep.mubr.bf16.mxu0 0
        %1534 = vmatmul.mubr.bf16.gmra.mxu0 %v1499
        %v1535 = vpop.f32.mrf.mxu0
        %v1536 = vadd.f32 0.0, %v1535
        %v1537 = vpop.f32.mrf.mxu0
        %v1538 = vpop.f32.mrf.mxu0
        %v1539 = vadd.f32 0.0, %v1538
        %v1540 = vpop.f32.mrf.mxu0
        %1541 = vdwg.mxu0
        %v1543 = vsel %vm837, %v1362, 0
        %1545 = vmatprep.subr.bf16.mxu0 0
        %1546 = vmatpush1.bf16.msra.mxu0 0
        %1547 = vmatprep.subr.bf16.mxu0 0
        %1548 = vmatpush1.bf16.msra.mxu0 0
        %1549 = vmatprep.subr.bf16.mxu0 0
        %1550 = vmatpush1.bf16.msra.mxu0 0
        %1551 = vmatprep.subr.bf16.mxu0 0
        %1552 = vmatpush1.bf16.msra.mxu0 0
        %1553 = vmatprep.subr.bf16.mxu0 0
        %1554 = vmatpush1.bf16.msra.mxu0 0
        %1555 = vmatprep.subr.bf16.mxu0 0
        %1556 = vmatpush1.bf16.msra.mxu0 0
        %1557 = vmatprep.subr.bf16.mxu0 0
        %1558 = vmatpush1.bf16.msra.mxu0 0
        %1559 = vmatprep.subr.bf16.mxu0 0
        %1560 = vmatpush1.bf16.msra.mxu0 %v826
        %1561 = vmatprep.subr.bf16.mxu0 0
        %1562 = vmatpush2.bf16.msra.mxu0 0
        %1563 = vmatprep.subr.bf16.mxu0 0
        %1564 = vmatpush2.bf16.msra.mxu0 0
        %1565 = vmatprep.subr.bf16.mxu0 0
        %1566 = vmatpush2.bf16.msra.mxu0 0
        %1567 = vmatprep.subr.bf16.mxu0 0
        %1568 = vmatpush2.bf16.msra.mxu0 0
        %1569 = vmatprep.subr.bf16.mxu0 0
        %1570 = vmatpush2.bf16.msra.mxu0 0
        %1571 = vmatprep.subr.bf16.mxu0 0
        %1572 = vmatpush2.bf16.msra.mxu0 0
        %1573 = vmatprep.subr.bf16.mxu0 0
        %1574 = vmatpush2.bf16.msra.mxu0 0
        %1575 = vmatprep.subr.bf16.mxu0 0
        %1576 = vmatpush2.bf16.msra.mxu0 0
        %1577 = vmatprep.mubr.bf16.mxu0 0
        %1578 = vmatmul.mubr.bf16.gmra.mxu0 %v1543
        %v1579 = vpop.f32.mrf.mxu0
        %v1580 = vadd.f32 0.0, %v1579
        %v1581 = vpop.f32.mrf.mxu0
        %v1582 = vpop.f32.mrf.mxu0
        %v1583 = vadd.f32 0.0, %v1582
        %v1584 = vpop.f32.mrf.mxu0
        %1585 = vdwg.mxu0
        %v1587 = vsel %vm837, %v1363, 0
        %1589 = vmatprep.subr.bf16.mxu0 0
        %1590 = vmatpush1.bf16.msra.mxu0 0
        %1591 = vmatprep.subr.bf16.mxu0 0
        %1592 = vmatpush1.bf16.msra.mxu0 0
        %1593 = vmatprep.subr.bf16.mxu0 0
        %1594 = vmatpush1.bf16.msra.mxu0 0
        %1595 = vmatprep.subr.bf16.mxu0 0
        %1596 = vmatpush1.bf16.msra.mxu0 0
        %1597 = vmatprep.subr.bf16.mxu0 0
        %1598 = vmatpush1.bf16.msra.mxu0 0
        %1599 = vmatprep.subr.bf16.mxu0 0
        %1600 = vmatpush1.bf16.msra.mxu0 0
        %1601 = vmatprep.subr.bf16.mxu0 0
        %1602 = vmatpush1.bf16.msra.mxu0 0
        %1603 = vmatprep.subr.bf16.mxu0 0
        %1604 = vmatpush1.bf16.msra.mxu0 %v829
        %1605 = vmatprep.subr.bf16.mxu0 0
        %1606 = vmatpush2.bf16.msra.mxu0 0
        %1607 = vmatprep.subr.bf16.mxu0 0
        %1608 = vmatpush2.bf16.msra.mxu0 0
        %1609 = vmatprep.subr.bf16.mxu0 0
        %1610 = vmatpush2.bf16.msra.mxu0 0
        %1611 = vmatprep.subr.bf16.mxu0 0
        %1612 = vmatpush2.bf16.msra.mxu0 0
        %1613 = vmatprep.subr.bf16.mxu0 0
        %1614 = vmatpush2.bf16.msra.mxu0 0
        %1615 = vmatprep.subr.bf16.mxu0 0
        %1616 = vmatpush2.bf16.msra.mxu0 0
        %1617 = vmatprep.subr.bf16.mxu0 0
        %1618 = vmatpush2.bf16.msra.mxu0 0
        %1619 = vmatprep.subr.bf16.mxu0 0
        %1620 = vmatpush2.bf16.msra.mxu0 0
        %1621 = vmatprep.mubr.bf16.mxu0 0
        %1622 = vmatmul.mubr.bf16.gmra.mxu0 %v1587
        %v1623 = vpop.f32.mrf.mxu0
        %v1624 = vadd.f32 0.0, %v1623
        %v1625 = vpop.f32.mrf.mxu0
        %v1626 = vpop.f32.mrf.mxu0
        %v1627 = vadd.f32 0.0, %v1626
        %v1628 = vpop.f32.mrf.mxu0
        %1629 = vdwg.mxu0
        %v1631 = vsel %vm837, %v1364, 0
        %1633 = vmatprep.subr.bf16.mxu0 0
        %1634 = vmatpush1.bf16.msra.mxu0 0
        %1635 = vmatprep.subr.bf16.mxu0 0
        %1636 = vmatpush1.bf16.msra.mxu0 0
        %1637 = vmatprep.subr.bf16.mxu0 0
        %1638 = vmatpush1.bf16.msra.mxu0 0
        %1639 = vmatprep.subr.bf16.mxu0 0
        %1640 = vmatpush1.bf16.msra.mxu0 0
        %1641 = vmatprep.subr.bf16.mxu0 0
        %1642 = vmatpush1.bf16.msra.mxu0 0
        %1643 = vmatprep.subr.bf16.mxu0 0
        %1644 = vmatpush1.bf16.msra.mxu0 0
        %1645 = vmatprep.subr.bf16.mxu0 0
        %1646 = vmatpush1.bf16.msra.mxu0 0
        %1647 = vmatprep.subr.bf16.mxu0 0
        %1648 = vmatpush1.bf16.msra.mxu0 %v832
        %1649 = vmatprep.subr.bf16.mxu0 0
        %1650 = vmatpush2.bf16.msra.mxu0 0
        %1651 = vmatprep.subr.bf16.mxu0 0
        %1652 = vmatpush2.bf16.msra.mxu0 0
        %1653 = vmatprep.subr.bf16.mxu0 0
        %1654 = vmatpush2.bf16.msra.mxu0 0
        %1655 = vmatprep.subr.bf16.mxu0 0
        %1656 = vmatpush2.bf16.msra.mxu0 0
        %1657 = vmatprep.subr.bf16.mxu0 0
        %1658 = vmatpush2.bf16.msra.mxu0 0
        %1659 = vmatprep.subr.bf16.mxu0 0
        %1660 = vmatpush2.bf16.msra.mxu0 0
        %1661 = vmatprep.subr.bf16.mxu0 0
        %1662 = vmatpush2.bf16.msra.mxu0 0
        %1663 = vmatprep.subr.bf16.mxu0 0
        %1664 = vmatpush2.bf16.msra.mxu0 0
        %1665 = vmatprep.mubr.bf16.mxu0 0
        %1666 = vmatmul.mubr.bf16.gmra.mxu0 %v1631
        %v1667 = vpop.f32.mrf.mxu0
        %v1668 = vadd.f32 0.0, %v1667
        %v1669 = vpop.f32.mrf.mxu0
        %v1670 = vpop.f32.mrf.mxu0
        %v1671 = vadd.f32 0.0, %v1670
        %v1672 = vpop.f32.mrf.mxu0
        %1673 = vdwg.mxu0
        %v1675 = vsel %vm837, %v1365, 0
        %1677 = vmatprep.subr.bf16.mxu0 0
        %1678 = vmatpush1.bf16.msra.mxu0 0
        %1679 = vmatprep.subr.bf16.mxu0 0
        %1680 = vmatpush1.bf16.msra.mxu0 0
        %1681 = vmatprep.subr.bf16.mxu0 0
        %1682 = vmatpush1.bf16.msra.mxu0 0
        %1683 = vmatprep.subr.bf16.mxu0 0
        %1684 = vmatpush1.bf16.msra.mxu0 0
        %1685 = vmatprep.subr.bf16.mxu0 0
        %1686 = vmatpush1.bf16.msra.mxu0 0
        %1687 = vmatprep.subr.bf16.mxu0 0
        %1688 = vmatpush1.bf16.msra.mxu0 0
        %1689 = vmatprep.subr.bf16.mxu0 0
        %1690 = vmatpush1.bf16.msra.mxu0 0
        %1691 = vmatprep.subr.bf16.mxu0 0
        %1692 = vmatpush1.bf16.msra.mxu0 %v835
        %1693 = vmatprep.subr.bf16.mxu0 0
        %1694 = vmatpush2.bf16.msra.mxu0 0
        %1695 = vmatprep.subr.bf16.mxu0 0
        %1696 = vmatpush2.bf16.msra.mxu0 0
        %1697 = vmatprep.subr.bf16.mxu0 0
        %1698 = vmatpush2.bf16.msra.mxu0 0
        %1699 = vmatprep.subr.bf16.mxu0 0
        %1700 = vmatpush2.bf16.msra.mxu0 0
        %1701 = vmatprep.subr.bf16.mxu0 0
        %1702 = vmatpush2.bf16.msra.mxu0 0
        %1703 = vmatprep.subr.bf16.mxu0 0
        %1704 = vmatpush2.bf16.msra.mxu0 0
        %1705 = vmatprep.subr.bf16.mxu0 0
        %1706 = vmatpush2.bf16.msra.mxu0 0
        %1707 = vmatprep.subr.bf16.mxu0 0
        %1708 = vmatpush2.bf16.msra.mxu0 0
        %1709 = vmatprep.mubr.bf16.mxu0 0
        %1710 = vmatmul.mubr.bf16.gmra.mxu0 %v1675
        %v1711 = vpop.f32.mrf.mxu0
        %v1712 = vadd.f32 0.0, %v1711
        %v1713 = vpop.f32.mrf.mxu0
        %v1714 = vpop.f32.mrf.mxu0
        %v1715 = vadd.f32 0.0, %v1714
        %v1716 = vpop.f32.mrf.mxu0
        %1717 = vdwg.mxu0
        %v1718 = vrcp.pop %v1312
        %v1719 = vrcp.pop %v1315
        %v1720 = vrcp.pop %v1318
        %v1721 = vrcp.pop %v1321
        %v1722 = vrcp.pop %v1324
        %v1723 = vrcp.pop %v1327
        %v1724 = vrcp.pop %v1330
        %v1725 = vrcp.pop %v1333
        %v1726 = vrcp.pop %v1336
        %v1727 = vrcp.pop %v1339
        %v1728 = vrcp.pop %v1342
        %v1729 = vrcp.pop %v1345
        %v1730 = vrcp.pop %v1348
        %v1731 = vrcp.pop %v1351
        %v1732 = vrcp.pop %v1354
        %v1733 = vrcp.pop %v1357
        %v1734 = vmul.f32 %v1404, %v1718
        %v1735 = vmul.f32 %v1407, %v1719
        %v1736 = vmul.f32 %v1448, %v1720
        %v1737 = vmul.f32 %v1451, %v1721
        %v1738 = vmul.f32 %v1492, %v1722
        %v1739 = vmul.f32 %v1495, %v1723
        %v1740 = vmul.f32 %v1536, %v1724
        %v1741 = vmul.f32 %v1539, %v1725
        %v1742 = vmul.f32 %v1580, %v1726
        %v1743 = vmul.f32 %v1583, %v1727
        %v1744 = vmul.f32 %v1624, %v1728
        %v1745 = vmul.f32 %v1627, %v1729
        %v1746 = vmul.f32 %v1668, %v1730
        %v1747 = vmul.f32 %v1671, %v1731
        %v1748 = vmul.f32 %v1712, %v1732
        %v1749 = vmul.f32 %v1715, %v1733
        %1752 = vrot.lane.b32.xlu0 %v1736, 16
        %v1753 = vpop.permute.xlu0 %1752
        %1754 = vrot.lane.b32.xlu0 %v1737, 16
        %v1755 = vpop.permute.xlu0 %1754
        %1760 = vrot.lane.b32.xlu0 %v1738, 32
        %v1761 = vpop.permute.xlu0 %1760
        %1762 = vrot.lane.b32.xlu0 %v1739, 32
        %v1763 = vpop.permute.xlu0 %1762
        %1768 = vrot.lane.b32.xlu0 %v1740, 48
        %v1769 = vpop.permute.xlu0 %1768
        %1770 = vrot.lane.b32.xlu0 %v1741, 48
        %v1771 = vpop.permute.xlu0 %1770
        %1776 = vrot.lane.b32.xlu0 %v1742, 64
        %v1777 = vpop.permute.xlu0 %1776
        %1778 = vrot.lane.b32.xlu0 %v1743, 64
        %v1779 = vpop.permute.xlu0 %1778
        %1784 = vrot.lane.b32.xlu0 %v1744, 80
        %v1785 = vpop.permute.xlu0 %1784
        %1786 = vrot.lane.b32.xlu0 %v1745, 80
        %v1787 = vpop.permute.xlu0 %1786
        %1792 = vrot.lane.b32.xlu0 %v1746, 96
        %v1793 = vpop.permute.xlu0 %1792
        %1794 = vrot.lane.b32.xlu0 %v1747, 96
        %v1795 = vpop.permute.xlu0 %1794
        %1800 = vrot.lane.b32.xlu0 %v1748, 112
        %v1801 = vpop.permute.xlu0 %1800
        %1802 = vrot.lane.b32.xlu0 %v1749, 112
        %v1803 = vpop.permute.xlu0 %1802
        %v1806 = vsel %vm837, %v1734, %v1753
        %v1807 = vsel %vm837, %v1735, %v1755
        %vm1808 = vcmask 261120
        %v1809 = vsel %vm1808, %v1806, %v1761
        %v1810 = vsel %vm1808, %v1807, %v1763
        %vm1811 = vcmask 392192
        %v1812 = vsel %vm1811, %v1809, %v1769
        %v1813 = vsel %vm1811, %v1810, %v1771
        %vm1814 = vcmask 523264
        %v1815 = vsel %vm1814, %v1812, %v1777
        %v1816 = vsel %vm1814, %v1813, %v1779
        %vm1817 = vcmask 654336
        %v1818 = vsel %vm1817, %v1815, %v1785
        %v1819 = vsel %vm1817, %v1816, %v1787
        %vm1820 = vcmask 785408
        %v1821 = vsel %vm1820, %v1818, %v1793
        %v1822 = vsel %vm1820, %v1819, %v1795
        %vm1823 = vcmask 916480
        %v1824 = vsel %vm1823, %v1821, %v1801
        %v1825 = vsel %vm1823, %v1822, %v1803
        %v1826 = vpack.c.bf16 %v1825, %v1824
        %v1827 = vld [vmem:[#allocation7] sm:$0xf]
        %v1828 = vld [vmem:[#allocation7 + $0x4] sm:$0xf]
        %v1829 = vld [vmem:[#allocation7 + $0x8] sm:$0xf]
        %v1830 = vld [vmem:[#allocation7 + $0xc] sm:$0xf]
        %v1831 = vld [vmem:[#allocation7 + $0x10] sm:$0xf]
        %v1832 = vld [vmem:[#allocation7 + $0x14] sm:$0xf]
        %v1833 = vld [vmem:[#allocation7 + $0x18] sm:$0xf]
        %v1834 = vld [vmem:[#allocation7 + $0x1c] sm:$0xf]
        %v1835 = vld [vmem:[#allocation7 + $0x20] sm:$0xf]
        %v1836 = vld [vmem:[#allocation7 + $0x24] sm:$0xf]
        %v1837 = vld [vmem:[#allocation7 + $0x28] sm:$0xf]
        %v1838 = vld [vmem:[#allocation7 + $0x2c] sm:$0xf]
        %v1839 = vld [vmem:[#allocation7 + $0x30] sm:$0xf]
        %v1840 = vld [vmem:[#allocation7 + $0x34] sm:$0xf]
        %v1841 = vld [vmem:[#allocation7 + $0x38] sm:$0xf]
        %v1842 = vld [vmem:[#allocation7 + $0x3c] sm:$0xf]
        %v1843 = vld [vmem:[%s4] sm:$0x1]
        %v1845 = vlaneseq
        %v1846 = vshrl.u32 %v1845, 7
        %v1847 = vsub.s32 0, %v1846
        %v1848 = vrot.slane %v1843, %v1847
        %v1866 = vunpack.c.l.b16 %v1827
        %v1867 = vunpack.c.l.b16 %v1828
        %v1868 = vunpack.c.l.b16 %v1829
        %v1869 = vunpack.c.l.b16 %v1830
        %v1870 = vunpack.c.l.b16 %v1831
        %v1871 = vunpack.c.l.b16 %v1832
        %v1872 = vunpack.c.l.b16 %v1833
        %v1873 = vunpack.c.l.b16 %v1834
        %v1874 = vunpack.c.l.b16 %v1835
        %v1875 = vunpack.c.l.b16 %v1836
        %v1876 = vunpack.c.l.b16 %v1837
        %v1877 = vunpack.c.l.b16 %v1838
        %v1878 = vunpack.c.l.b16 %v1839
        %v1879 = vunpack.c.l.b16 %v1840
        %v1880 = vunpack.c.l.b16 %v1841
        %v1881 = vunpack.c.l.b16 %v1842
        %v1882 = vpack.c.b16 %v1867, %v1866
        %v1883 = vpack.c.b16 %v1869, %v1868
        %v1884 = vpack.c.b16 %v1871, %v1870
        %v1885 = vpack.c.b16 %v1873, %v1872
        %v1886 = vpack.c.b16 %v1875, %v1874
        %v1887 = vpack.c.b16 %v1877, %v1876
        %v1888 = vpack.c.b16 %v1879, %v1878
        %v1889 = vpack.c.b16 %v1881, %v1880
        %1898 = vmatprep.subr.bf16.mxu0 0
        %1899 = vmatpush1.bf16.msra.mxu0 %v1889
        %1900 = vmatprep.subr.bf16.mxu0 0
        %1901 = vmatpush1.bf16.msra.mxu0 %v1888
        %1902 = vmatprep.subr.bf16.mxu0 0
        %1903 = vmatpush1.bf16.msra.mxu0 %v1887
        %1904 = vmatprep.subr.bf16.mxu0 0
        %1905 = vmatpush1.bf16.msra.mxu0 %v1886
        %1906 = vmatprep.subr.bf16.mxu0 0
        %1907 = vmatpush1.bf16.msra.mxu0 %v1885
        %1908 = vmatprep.subr.bf16.mxu0 0
        %1909 = vmatpush1.bf16.msra.mxu0 %v1884
        %1910 = vmatprep.subr.bf16.mxu0 0
        %1911 = vmatpush1.bf16.msra.mxu0 %v1883
        %1912 = vmatprep.subr.bf16.mxu0 0
        %1913 = vmatpush1.bf16.msra.mxu0 %v1882
        %1914 = vmatprep.subr.bf16.mxu0 0
        %1915 = vmatpush2.bf16.msra.mxu0 0
        %1916 = vmatprep.subr.bf16.mxu0 0
        %1917 = vmatpush2.bf16.msra.mxu0 0
        %1918 = vmatprep.subr.bf16.mxu0 0
        %1919 = vmatpush2.bf16.msra.mxu0 0
        %1920 = vmatprep.subr.bf16.mxu0 0
        %1921 = vmatpush2.bf16.msra.mxu0 0
        %1922 = vmatprep.subr.bf16.mxu0 0
        %1923 = vmatpush2.bf16.msra.mxu0 0
        %1924 = vmatprep.subr.bf16.mxu0 0
        %1925 = vmatpush2.bf16.msra.mxu0 0
        %1926 = vmatprep.subr.bf16.mxu0 0
        %1927 = vmatpush2.bf16.msra.mxu0 0
        %1928 = vmatprep.subr.bf16.mxu0 0
        %1929 = vmatpush2.bf16.msra.mxu0 0
        %1930 = vmatprep.mubr.bf16.mxu0 0
        %1931 = vmatmul.mubr.bf16.gmra.mxu0 %v1826
        %v1932 = vpop.f32.mrf.mxu0
        %v1933 = vadd.f32 %v1848, %v1932
        %v1934 = vpop.f32.mrf.mxu0
        %v1935 = vpop.f32.mrf.mxu0
        %v1936 = vadd.f32 %v1848, %v1935
        %v1937 = vpop.f32.mrf.mxu0
        %1938 = vdwg.mxu0
        %v1939 = vld [vmem:[%s5] sm:$0x1]
        %v1940 = vld [vmem:[%s6] sm:$0x1]
        %1941 = vadd.xlane.f32.xlu0 %v1933
        %v1942 = vpop.xlane.xlu0 %1941
        %1943 = vadd.xlane.f32.xlu0 %v1936
        %v1944 = vpop.xlane.xlu0 %1943
        %v1945 = vrcp.pop 128.0
        %v1946 = vmul.f32 %v1942, %v1945
        %v1947 = vmul.f32 %v1944, %v1945
        %v1948 = vsub.f32 %v1933, %v1946
        %v1949 = vsub.f32 %v1936, %v1947
        %v1950 = vmul.f32 %v1948, %v1948
        %v1951 = vmul.f32 %v1949, %v1949
        %1952 = vadd.xlane.f32.xlu0 %v1950
        %v1953 = vpop.xlane.xlu0 %1952
        %1954 = vadd.xlane.f32.xlu0 %v1951
        %v1955 = vpop.xlane.xlu0 %1954
        %v1956 = vmul.f32 %v1953, %v1945
        %v1957 = vmul.f32 %v1955, %v1945
        %v1958 = vadd.f32 %v1956, 1e-05
        %v1959 = vadd.f32 %v1957, 1e-05
        %v1960 = vrsqrt.pop %v1958
        %v1961 = vrsqrt.pop %v1959
        %v1962 = vmul.f32 %v1948, %v1960
        %v1963 = vmul.f32 %v1949, %v1961
        %v1965 = vlaneseq
        %v1966 = vshrl.u32 %v1965, 7
        %v1967 = vsub.s32 0, %v1966
        %v1968 = vrot.slane %v1939, %v1967
        %v1970 = vmul.f32 %v1962, %v1968
        %v1971 = vmul.f32 %v1963, %v1968
        %v1973 = vlaneseq
        %v1974 = vshrl.u32 %v1973, 7
        %v1975 = vsub.s32 0, %v1974
        %v1976 = vrot.slane %v1940, %v1975
        %v1978 = vadd.f32 %v1970, %v1976
        %v1979 = vadd.f32 %v1971, %v1976
        %v1980 = vmax.f32 %v1978, 0.0
        %v1981 = vmax.f32 %v1979, 0.0
        %v1982 = vadd.f32 %v518, %v1980
        %v1983 = vadd.f32 %v519, %v1981
        %v1984 = vpack.c.bf16 %v1983, %v1982
        %v1985 = vld [vmem:[#allocation8] sm:$0xff]
        %v1986 = vld [vmem:[#allocation8 + $0x8] sm:$0xff]
        %v1987 = vld [vmem:[#allocation8 + $0x10] sm:$0xff]
        %v1988 = vld [vmem:[#allocation8 + $0x18] sm:$0xff]
        %v1989 = vld [vmem:[#allocation8 + $0x20] sm:$0xff]
        %v1990 = vld [vmem:[#allocation8 + $0x28] sm:$0xff]
        %v1991 = vld [vmem:[#allocation8 + $0x30] sm:$0xff]
        %v1992 = vld [vmem:[#allocation8 + $0x38] sm:$0xff]
        %v1993 = vld [vmem:[#allocation8 + $0x40] sm:$0xff]
        %v1994 = vld [vmem:[#allocation8 + $0x48] sm:$0xff]
        %v1995 = vld [vmem:[#allocation8 + $0x50] sm:$0xff]
        %v1996 = vld [vmem:[#allocation8 + $0x58] sm:$0xff]
        %v1997 = vld [vmem:[#allocation8 + $0x60] sm:$0xff]
        %v1998 = vld [vmem:[#allocation8 + $0x68] sm:$0xff]
        %v1999 = vld [vmem:[#allocation8 + $0x70] sm:$0xff]
        %v2000 = vld [vmem:[#allocation8 + $0x78] sm:$0xff]
        %v2001 = vld [vmem:[%s8] sm:$0x3]
        %v2003 = vlaneseq
        %v2004 = vshrl.u32 %v2003, 7
        %v2005 = vsub.s32 0, %v2004
        %v2006 = vrot.slane %v2001, %v2005
        %v2007 = vlaneseq
        %v2008 = vshrl.u32 %v2007, 7
        %v2009 = vsub.s32 1, %v2008
        %v2010 = vrot.slane %v2001, %v2009
        %v2029 = vunpack.c.l.b16 %v1985
        %v2030 = vunpack.c.h.b16 %v1985
        %v2031 = vunpack.c.l.b16 %v1986
        %v2032 = vunpack.c.h.b16 %v1986
        %v2033 = vunpack.c.l.b16 %v1987
        %v2034 = vunpack.c.h.b16 %v1987
        %v2035 = vunpack.c.l.b16 %v1988
        %v2036 = vunpack.c.h.b16 %v1988
        %v2037 = vunpack.c.l.b16 %v1989
        %v2038 = vunpack.c.h.b16 %v1989
        %v2039 = vunpack.c.l.b16 %v1990
        %v2040 = vunpack.c.h.b16 %v1990
        %v2041 = vunpack.c.l.b16 %v1991
        %v2042 = vunpack.c.h.b16 %v1991
        %v2043 = vunpack.c.l.b16 %v1992
        %v2044 = vunpack.c.h.b16 %v1992
        %v2045 = vunpack.c.l.b16 %v1993
        %v2046 = vunpack.c.h.b16 %v1993
        %v2047 = vunpack.c.l.b16 %v1994
        %v2048 = vunpack.c.h.b16 %v1994
        %v2049 = vunpack.c.l.b16 %v1995
        %v2050 = vunpack.c.h.b16 %v1995
        %v2051 = vunpack.c.l.b16 %v1996
        %v2052 = vunpack.c.h.b16 %v1996
        %v2053 = vunpack.c.l.b16 %v1997
        %v2054 = vunpack.c.h.b16 %v1997
        %v2055 = vunpack.c.l.b16 %v1998
        %v2056 = vunpack.c.h.b16 %v1998
        %v2057 = vunpack.c.l.b16 %v1999
        %v2058 = vunpack.c.h.b16 %v1999
        %v2059 = vunpack.c.l.b16 %v2000
        %v2060 = vunpack.c.h.b16 %v2000
        %v2061 = vpack.c.b16 %v2031, %v2029
        %v2062 = vpack.c.b16 %v2032, %v2030
        %v2063 = vpack.c.b16 %v2035, %v2033
        %v2064 = vpack.c.b16 %v2036, %v2034
        %v2065 = vpack.c.b16 %v2039, %v2037
        %v2066 = vpack.c.b16 %v2040, %v2038
        %v2067 = vpack.c.b16 %v2043, %v2041
        %v2068 = vpack.c.b16 %v2044, %v2042
        %v2069 = vpack.c.b16 %v2047, %v2045
        %v2070 = vpack.c.b16 %v2048, %v2046
        %v2071 = vpack.c.b16 %v2051, %v2049
        %v2072 = vpack.c.b16 %v2052, %v2050
        %v2073 = vpack.c.b16 %v2055, %v2053
        %v2074 = vpack.c.b16 %v2056, %v2054
        %v2075 = vpack.c.b16 %v2059, %v2057
        %v2076 = vpack.c.b16 %v2060, %v2058
        %2093 = vmatprep.subr.bf16.mxu0 %v2076
        %2094 = vmatpush1.bf16.msra.mxu0 %v2075
        %2095 = vmatprep.subr.bf16.mxu0 %v2074
        %2096 = vmatpush1.bf16.msra.mxu0 %v2073
        %2097 = vmatprep.subr.bf16.mxu0 %v2072
        %2098 = vmatpush1.bf16.msra.mxu0 %v2071
        %2099 = vmatprep.subr.bf16.mxu0 %v2070
        %2100 = vmatpush1.bf16.msra.mxu0 %v2069
        %2101 = vmatprep.subr.bf16.mxu0 %v2068
        %2102 = vmatpush1.bf16.msra.mxu0 %v2067
        %2103 = vmatprep.subr.bf16.mxu0 %v2066
        %2104 = vmatpush1.bf16.msra.mxu0 %v2065
        %2105 = vmatprep.subr.bf16.mxu0 %v2064
        %2106 = vmatpush1.bf16.msra.mxu0 %v2063
        %2107 = vmatprep.subr.bf16.mxu0 %v2062
        %2108 = vmatpush1.bf16.msra.mxu0 %v2061
        %2109 = vmatprep.subr.bf16.mxu0 0
        %2110 = vmatpush2.bf16.msra.mxu0 0
        %2111 = vmatprep.subr.bf16.mxu0 0
        %2112 = vmatpush2.bf16.msra.mxu0 0
        %2113 = vmatprep.subr.bf16.mxu0 0
        %2114 = vmatpush2.bf16.msra.mxu0 0
        %2115 = vmatprep.subr.bf16.mxu0 0
        %2116 = vmatpush2.bf16.msra.mxu0 0
        %2117 = vmatprep.subr.bf16.mxu0 0
        %2118 = vmatpush2.bf16.msra.mxu0 0
        %2119 = vmatprep.subr.bf16.mxu0 0
        %2120 = vmatpush2.bf16.msra.mxu0 0
        %2121 = vmatprep.subr.bf16.mxu0 0
        %2122 = vmatpush2.bf16.msra.mxu0 0
        %2123 = vmatprep.subr.bf16.mxu0 0
        %2124 = vmatpush2.bf16.msra.mxu0 0
        %2125 = vmatprep.mubr.bf16.mxu0 0
        %2126 = vmatmul.mubr.bf16.gmra.mxu0 %v1984
        %v2127 = vpop.f32.mrf.mxu0
        %v2128 = vadd.f32 %v2006, %v2127
        %v2129 = vpop.f32.mrf.mxu0
        %v2130 = vadd.f32 %v2010, %v2129
        %v2131 = vpop.f32.mrf.mxu0
        %v2132 = vadd.f32 %v2006, %v2131
        %v2133 = vpop.f32.mrf.mxu0
        %v2134 = vadd.f32 %v2010, %v2133
        %2135 = vdwg.mxu0
        %v2136 = vmax.f32 %v2128, 0.0
        %v2137 = vmax.f32 %v2130, 0.0
        %v2138 = vmax.f32 %v2132, 0.0
        %v2139 = vmax.f32 %v2134, 0.0
        %v2140 = vpack.c.bf16 %v2138, %v2136
        %v2141 = vpack.c.bf16 %v2139, %v2137
        %v2142 = vld [vmem:[#allocation10] sm:$0xf]
        %v2143 = vld [vmem:[#allocation10 + $0x4] sm:$0xf]
        %v2144 = vld [vmem:[#allocation10 + $0x8] sm:$0xf]
        %v2145 = vld [vmem:[#allocation10 + $0xc] sm:$0xf]
        %v2146 = vld [vmem:[#allocation10 + $0x10] sm:$0xf]
        %v2147 = vld [vmem:[#allocation10 + $0x14] sm:$0xf]
        %v2148 = vld [vmem:[#allocation10 + $0x18] sm:$0xf]
        %v2149 = vld [vmem:[#allocation10 + $0x1c] sm:$0xf]
        %v2150 = vld [vmem:[#allocation10 + $0x20] sm:$0xf]
        %v2151 = vld [vmem:[#allocation10 + $0x24] sm:$0xf]
        %v2152 = vld [vmem:[#allocation10 + $0x28] sm:$0xf]
        %v2153 = vld [vmem:[#allocation10 + $0x2c] sm:$0xf]
        %v2154 = vld [vmem:[#allocation10 + $0x30] sm:$0xf]
        %v2155 = vld [vmem:[#allocation10 + $0x34] sm:$0xf]
        %v2156 = vld [vmem:[#allocation10 + $0x38] sm:$0xf]
        %v2157 = vld [vmem:[#allocation10 + $0x3c] sm:$0xf]
        %v2158 = vld [vmem:[#allocation10 + $0x40] sm:$0xf]
        %v2159 = vld [vmem:[#allocation10 + $0x44] sm:$0xf]
        %v2160 = vld [vmem:[#allocation10 + $0x48] sm:$0xf]
        %v2161 = vld [vmem:[#allocation10 + $0x4c] sm:$0xf]
        %v2162 = vld [vmem:[#allocation10 + $0x50] sm:$0xf]
        %v2163 = vld [vmem:[#allocation10 + $0x54] sm:$0xf]
        %v2164 = vld [vmem:[#allocation10 + $0x58] sm:$0xf]
        %v2165 = vld [vmem:[#allocation10 + $0x5c] sm:$0xf]
        %v2166 = vld [vmem:[#allocation10 + $0x60] sm:$0xf]
        %v2167 = vld [vmem:[#allocation10 + $0x64] sm:$0xf]
        %v2168 = vld [vmem:[#allocation10 + $0x68] sm:$0xf]
        %v2169 = vld [vmem:[#allocation10 + $0x6c] sm:$0xf]
        %v2170 = vld [vmem:[#allocation10 + $0x70] sm:$0xf]
        %v2171 = vld [vmem:[#allocation10 + $0x74] sm:$0xf]
        %v2172 = vld [vmem:[#allocation10 + $0x78] sm:$0xf]
        %v2173 = vld [vmem:[#allocation10 + $0x7c] sm:$0xf]
        %v2174 = vld [vmem:[%s10] sm:$0x1]
        %v2176 = vlaneseq
        %v2177 = vshrl.u32 %v2176, 7
        %v2178 = vsub.s32 0, %v2177
        %v2179 = vrot.slane %v2174, %v2178
        %v2213 = vunpack.c.l.b16 %v2142
        %v2214 = vunpack.c.l.b16 %v2143
        %v2215 = vunpack.c.l.b16 %v2144
        %v2216 = vunpack.c.l.b16 %v2145
        %v2217 = vunpack.c.l.b16 %v2146
        %v2218 = vunpack.c.l.b16 %v2147
        %v2219 = vunpack.c.l.b16 %v2148
        %v2220 = vunpack.c.l.b16 %v2149
        %v2221 = vunpack.c.l.b16 %v2150
        %v2222 = vunpack.c.l.b16 %v2151
        %v2223 = vunpack.c.l.b16 %v2152
        %v2224 = vunpack.c.l.b16 %v2153
        %v2225 = vunpack.c.l.b16 %v2154
        %v2226 = vunpack.c.l.b16 %v2155
        %v2227 = vunpack.c.l.b16 %v2156
        %v2228 = vunpack.c.l.b16 %v2157
        %v2229 = vunpack.c.l.b16 %v2158
        %v2230 = vunpack.c.l.b16 %v2159
        %v2231 = vunpack.c.l.b16 %v2160
        %v2232 = vunpack.c.l.b16 %v2161
        %v2233 = vunpack.c.l.b16 %v2162
        %v2234 = vunpack.c.l.b16 %v2163
        %v2235 = vunpack.c.l.b16 %v2164
        %v2236 = vunpack.c.l.b16 %v2165
        %v2237 = vunpack.c.l.b16 %v2166
        %v2238 = vunpack.c.l.b16 %v2167
        %v2239 = vunpack.c.l.b16 %v2168
        %v2240 = vunpack.c.l.b16 %v2169
        %v2241 = vunpack.c.l.b16 %v2170
        %v2242 = vunpack.c.l.b16 %v2171
        %v2243 = vunpack.c.l.b16 %v2172
        %v2244 = vunpack.c.l.b16 %v2173
        %v2245 = vpack.c.b16 %v2214, %v2213
        %v2246 = vpack.c.b16 %v2216, %v2215
        %v2247 = vpack.c.b16 %v2218, %v2217
        %v2248 = vpack.c.b16 %v2220, %v2219
        %v2249 = vpack.c.b16 %v2222, %v2221
        %v2250 = vpack.c.b16 %v2224, %v2223
        %v2251 = vpack.c.b16 %v2226, %v2225
        %v2252 = vpack.c.b16 %v2228, %v2227
        %v2253 = vpack.c.b16 %v2230, %v2229
        %v2254 = vpack.c.b16 %v2232, %v2231
        %v2255 = vpack.c.b16 %v2234, %v2233
        %v2256 = vpack.c.b16 %v2236, %v2235
        %v2257 = vpack.c.b16 %v2238, %v2237
        %v2258 = vpack.c.b16 %v2240, %v2239
        %v2259 = vpack.c.b16 %v2242, %v2241
        %v2260 = vpack.c.b16 %v2244, %v2243
        %2277 = vmatprep.subr.bf16.mxu0 0
        %2278 = vmatpush1.bf16.msra.mxu0 %v2252
        %2279 = vmatprep.subr.bf16.mxu0 0
        %2280 = vmatpush1.bf16.msra.mxu0 %v2251
        %2281 = vmatprep.subr.bf16.mxu0 0
        %2282 = vmatpush1.bf16.msra.mxu0 %v2250
        %2283 = vmatprep.subr.bf16.mxu0 0
        %2284 = vmatpush1.bf16.msra.mxu0 %v2249
        %2285 = vmatprep.subr.bf16.mxu0 0
        %2286 = vmatpush1.bf16.msra.mxu0 %v2248
        %2287 = vmatprep.subr.bf16.mxu0 0
        %2288 = vmatpush1.bf16.msra.mxu0 %v2247
        %2289 = vmatprep.subr.bf16.mxu0 0
        %2290 = vmatpush1.bf16.msra.mxu0 %v2246
        %2291 = vmatprep.subr.bf16.mxu0 0
        %2292 = vmatpush1.bf16.msra.mxu0 %v2245
        %2293 = vmatprep.subr.bf16.mxu0 0
        %2294 = vmatpush2.bf16.msra.mxu0 %v2260
        %2295 = vmatprep.subr.bf16.mxu0 0
        %2296 = vmatpush2.bf16.msra.mxu0 %v2259
        %2297 = vmatprep.subr.bf16.mxu0 0
        %2298 = vmatpush2.bf16.msra.mxu0 %v2258
        %2299 = vmatprep.subr.bf16.mxu0 0
        %2300 = vmatpush2.bf16.msra.mxu0 %v2257
        %2301 = vmatprep.subr.bf16.mxu0 0
        %2302 = vmatpush2.bf16.msra.mxu0 %v2256
        %2303 = vmatprep.subr.bf16.mxu0 0
        %2304 = vmatpush2.bf16.msra.mxu0 %v2255
        %2305 = vmatprep.subr.bf16.mxu0 0
        %2306 = vmatpush2.bf16.msra.mxu0 %v2254
        %2307 = vmatprep.subr.bf16.mxu0 0
        %2308 = vmatpush2.bf16.msra.mxu0 %v2253
        %2309 = vmatprep.mubr.bf16.mxu0 %v2141
        %2310 = vmatmul.mubr.bf16.gmra.mxu0 %v2140
        %v2311 = vpop.f32.mrf.mxu0
        %v2312 = vadd.f32 %v2179, %v2311
        %v2313 = vpop.f32.mrf.mxu0
        %v2314 = vpop.f32.mrf.mxu0
        %v2315 = vadd.f32 %v2179, %v2314
        %v2316 = vpop.f32.mrf.mxu0
        %2317 = vdwg.mxu0
        %v2318 = vld [vmem:[%s11] sm:$0x1]
        %v2319 = vld [vmem:[%s12] sm:$0x1]
        %2320 = vadd.xlane.f32.xlu0 %v2312
        %v2321 = vpop.xlane.xlu0 %2320
        %2322 = vadd.xlane.f32.xlu0 %v2315
        %v2323 = vpop.xlane.xlu0 %2322
        %v2324 = vmul.f32 %v2321, %v1945
        %v2325 = vmul.f32 %v2323, %v1945
        %v2326 = vsub.f32 %v2312, %v2324
        %v2327 = vsub.f32 %v2315, %v2325
        %v2328 = vmul.f32 %v2326, %v2326
        %v2329 = vmul.f32 %v2327, %v2327
        %2330 = vadd.xlane.f32.xlu0 %v2328
        %v2331 = vpop.xlane.xlu0 %2330
        %2332 = vadd.xlane.f32.xlu0 %v2329
        %v2333 = vpop.xlane.xlu0 %2332
        %v2334 = vmul.f32 %v2331, %v1945
        %v2335 = vmul.f32 %v2333, %v1945
        %v2336 = vadd.f32 %v2334, 1e-05
        %v2337 = vadd.f32 %v2335, 1e-05
        %v2338 = vrsqrt.pop %v2336
        %v2339 = vrsqrt.pop %v2337
        %v2340 = vmul.f32 %v2326, %v2338
        %v2341 = vmul.f32 %v2327, %v2339
        %v2343 = vlaneseq
        %v2344 = vshrl.u32 %v2343, 7
        %v2345 = vsub.s32 0, %v2344
        %v2346 = vrot.slane %v2318, %v2345
        %v2348 = vmul.f32 %v2340, %v2346
        %v2349 = vmul.f32 %v2341, %v2346
        %v2351 = vlaneseq
        %v2352 = vshrl.u32 %v2351, 7
        %v2353 = vsub.s32 0, %v2352
        %v2354 = vrot.slane %v2319, %v2353
        %v2356 = vadd.f32 %v2348, %v2354
        %v2357 = vadd.f32 %v2349, %v2354
        %v2358 = vmax.f32 %v2356, 0.0
        %v2359 = vmax.f32 %v2357, 0.0
        %v2360 = vadd.f32 %v1982, %v2358
        %v2361 = vadd.f32 %v1983, %v2359
        %2362 = vst [vmem:[%s516] sm:$0xff] %v2360
        %2363 = vst [vmem:[%s516 + $0x8] sm:$0xff] %v2361
        %s2364 = sand.u32 %s318, 1
        %s2365 = scalar_lea.sflag [#allocation4], %s2364
        %s2366 = sand.u32 %s318, 1
        %s2367 = smul.addr %s2366, 16
        %s2368 = scalar_lea.vmem [#allocation11], %s2367
        // Predicated region
        $region93: #{tpu_custom_call.1} parent=71 // pred_check
          %p2369 = pneg %p328
        $region94: #{tpu_custom_call.1} parent=71 // pred_check_branch
          %2371 = sbr.rel (%p2369) target = $region96
        $region95: #{tpu_custom_call.1} parent=71 // pred_region
          %s2373 = ssub.s32 256, 256
          %2374 = vsyncadd %s2365, %s2373
          %s2375 = smul.addr %s32, 2
          %s2376 = smul.addr %s2375, 128
          %s2377 = scalar_lea.hbm %s13, %s2376
          %s2378 = sshll.u32 %s2368, 4
          %s2379 = int_to_ptr.vmem [resolvable:$true] %s2378
          %2384 = dma.vmem_to_hbm [thread:$0]  %s2379, 256, %s2377, %s2365, 128, 128, 8
        $region96: #{tpu_custom_call.1} parent=71 // pred_fallthru
          _
      $region72: #{tpu_custom_call.1} parent=5 // pred_fallthru
        _
      %p2385 = scmp.le.s32.totalorder 2, %s27
      // Predicated region
      $region97: #{tpu_custom_call.1} parent=5 // pred_check
        %p2386 = pneg %p2385
      $region98: #{tpu_custom_call.1} parent=5 // pred_check_branch
        %2388 = sbr.rel (%p2386) target = $region100
      $region99: #{tpu_custom_call.1} parent=5 // pred_region
        %s2389 = ssub.s32 %s27, 2
        // Predicated region
        $region101: #{tpu_custom_call.1} parent=99 // pred_check
          %p2390 = pneg %p334
        $region102: #{tpu_custom_call.1} parent=99 // pred_check_branch
          %2392 = sbr.rel (%p2390) target = $region104
        $region103: #{tpu_custom_call.1} parent=99 // pred_region
          %s2393 = sand.u32 %s319, 1
          %s2394 = scalar_lea.sflag [#allocation4], %s2393
          %s2395 = sand.u32 %s319, 1
          %s2396 = smul.addr %s2395, 16
          %s2397 = scalar_lea.vmem [#allocation11], %s2396
          %2398 = dma.done %s2394, 256
        $region104: #{tpu_custom_call.1} parent=99 // pred_fallthru
          _
      $region100: #{tpu_custom_call.1} parent=5 // pred_fallthru
        _
    $region6: #{tpu_custom_call.1} parent=1 // loop_footer
      %s31 = sadd.s32 1, %s27
    $region7: #{tpu_custom_call.1} parent=1 // loop_footer_branch
      %26 = sbr.rel target = $region3
    $region8: #{tpu_custom_call.1} parent=1 // loop_exit
      _
    %2399 = vsyncpa [#allocation3], 1
    %s2400 = scalar_lea.sflag [#allocation3], 1
    %2401 = vsyncpa %s2400, 1
    %2402 = vsyncpa [#allocation6], 1
    %2403 = vsyncpa [#allocation9], 1
    %2404 = vsyncpa [#allocation4], 1
    %s2405 = scalar_lea.sflag [#allocation4], 1
    %2406 = vsyncpa %s2405, 1

</llo_original>
